<compile_context>
chip_gen: v7x
topology: tpu7x:2x2x1
jax: 0.10.0
libtpu: 0.0.40
codegen_flags: <defaults>
</compile_context>

<pallas_src>
import math

import jax
import jax.numpy as jnp
from jax.experimental import pallas as pl
from jax.experimental.pallas import tpu as pltpu

EPS = 1e-8
_SINH_CLAMP_MAX = math.asinh(2 ** 15)

# ---------------- small synthetic config ----------------
B = 8             # batch
C, H, W = 3, 16, 16
VIS_WIDTH = 128   # visual.width
TXT_WIDTH = 128   # textual.width
EMBED_DIM = 64    # embed_dim
CTX_LEN = 16      # textual.context_length
SEQ_LEN = 8       # padded token length used here
VOCAB = 64
CURV_INIT = 1.0
ENTAIL_WEIGHT = 0.2
PIXEL_MEAN = jnp.array([0.485, 0.456, 0.406], jnp.float32)
PIXEL_STD = jnp.array([0.229, 0.224, 0.225], jnp.float32)
_RANK = 0  # single process

_VMEM = pltpu.MemorySpace.VMEM
_SMEM = pltpu.MemorySpace.SMEM


# ---------------- in-kernel helpers ----------------
def _exp_map0(z, curv):
    """lorentz.exp_map0: sinh(sqrt(c)*||z||) * z / (sqrt(c)*||z||)."""
    rc = jnp.sqrt(curv * jnp.sum(z * z, axis=-1, keepdims=True))
    s_in = jnp.clip(rc, EPS, _SINH_CLAMP_MAX)
    sinh = 0.5 * (jnp.exp(s_in) - jnp.exp(-s_in))
    return sinh * z / jnp.maximum(rc, EPS)


def _xyT(x, y):
    # x @ y.T without materializing a transpose (contract last dims).
    return jax.lax.dot_general(x, y, (((1,), (1,)), ((), ())),
                               preferred_element_type=jnp.float32)


# ---------------- fused kernel ----------------
def _meru_fused_kernel(s_ref, eos_tok_ref, eos_idx_ref, pix_ref,
                       w_vis_hbm, vis_bias_ref, tok_emb_ref, pos_emb_ref,
                       w_mix_ref, w_proj_ref,
                       out_ref,
                       w_vis_vmem, dma_sem):
    # Kick off the big visual-encoder-weight DMA immediately; the entire text
    # path below runs while it is in flight.
    vis_cp = pltpu.make_async_copy(w_vis_hbm, w_vis_vmem, dma_sem)
    vis_cp.start()

    # s = [exp(v_alpha), exp(t_alpha), curv, 1/curv, sqrt(curv), logit_scale]
    v_alpha = s_ref[0]
    t_alpha = s_ref[1]
    curv = s_ref[2]
    inv_curv = s_ref[3]
    sqrt_curv = s_ref[4]
    scale = s_ref[5]

    n = out_ref.shape[0]

    # ---- text path: one-hot matmul gather of EOS rows, then per-token mix ----
    tok_iota = jax.lax.broadcasted_iota(jnp.int32, (n, VOCAB), 1)
    pos_iota = jax.lax.broadcasted_iota(jnp.int32, (n, CTX_LEN), 1)
    onehot_tok = (tok_iota == eos_tok_ref[...]).astype(jnp.bfloat16)   # (B, VOCAB)
    onehot_pos = (pos_iota == eos_idx_ref[...]).astype(jnp.bfloat16)   # (B, CTX)
    txt_eos = (jnp.dot(onehot_tok, tok_emb_ref[...],
                       preferred_element_type=jnp.float32)
               + jnp.dot(onehot_pos, pos_emb_ref[...],
                         preferred_element_type=jnp.float32))          # (B, 128)
    txt_mixed = jnp.dot(txt_eos.astype(jnp.bfloat16), w_mix_ref[...],
                        preferred_element_type=jnp.float32)            # (B, 128)

    # ---- visual path: wait for weight DMA, then fused (pre-scaled) encoder ----
    vis_cp.wait()
    vis = (jnp.dot(pix_ref[...].astype(jnp.bfloat16), w_vis_vmem[...],
                   preferred_element_type=jnp.float32)
           + vis_bias_ref[...])                                         # (B, 128)

    # ---- merged projection (W_vproj | W_tproj) + alpha + exp_map0 ----
    stacked = jnp.concatenate([vis, txt_mixed], axis=0).astype(jnp.bfloat16)  # (2B,128)
    proj = jnp.dot(stacked, w_proj_ref[...],
                   preferred_element_type=jnp.float32)                  # (2B, 128)
    img_z = proj[:n, :EMBED_DIM] * v_alpha
    txt_z = proj[n:, EMBED_DIM:] * t_alpha
    img = _exp_map0(img_z, curv)                                        # (B, D)
    txt = _exp_map0(txt_z, curv)                                        # (B, D)

    # ---- Lorentz geometry ----
    img_sq = jnp.sum(img * img, axis=-1, keepdims=True)
    txt_sq = jnp.sum(txt * txt, axis=-1, keepdims=True)
    img_time = jnp.sqrt(inv_curv + img_sq)                              # (B, 1)
    txt_time = jnp.sqrt(inv_curv + txt_sq)                              # (B, 1)

    # One fused pairwise Lorentz inner product: augment the spatial part with
    # the (negated) time component in lane D (zero-padded to 128 lanes so the
    # matmul stays fully lane-aligned). text_logits is the transpose (symmetry).
    lane64 = jax.lax.broadcasted_iota(jnp.int32, (n, EMBED_DIM), 1)
    aug_img = jnp.concatenate(
        [img, jnp.where(lane64 == 0, img_time, 0.0)], axis=-1)          # (B, 128)
    aug_txt = jnp.concatenate(
        [txt, jnp.where(lane64 == 0, -txt_time, 0.0)], axis=-1)         # (B, 128)
    inner = _xyT(aug_img, aug_txt)                                      # (B, B)
    d = jnp.maximum(-curv * inner - 1.0, EPS)                           # c_xyl - 1, clamped
    dist = jnp.log(1.0 + d + jnp.sqrt(d * (d + 2.0))) / sqrt_curv       # stable acosh
    sl = scale * (-dist)                                                # scaled image logits

    rows = jax.lax.broadcasted_iota(jnp.int32, (n, n), 0)
    cols = jax.lax.broadcasted_iota(jnp.int32, (n, n), 1)
    eye = (rows == cols).astype(jnp.float32)   # targets = arange(B) + B*rank, rank=0
    diag_r = jnp.sum(sl * eye, axis=-1, keepdims=True)                  # (B, 1)
    diag_c = jnp.sum(sl * eye, axis=0, keepdims=True)                   # (1, B)

    # image CE over rows, text CE over columns (== rows of the transpose).
    m_r = jnp.max(sl, axis=-1, keepdims=True)
    lse_r = m_r + jnp.log(jnp.sum(jnp.exp(sl - m_r), axis=-1, keepdims=True))
    ce_img = lse_r - diag_r                                             # (B, 1)

    m_c = jnp.max(sl, axis=0, keepdims=True)
    lse_c = m_c + jnp.log(jnp.sum(jnp.exp(sl - m_c), axis=0, keepdims=True))
    ce_txt = lse_c - diag_c                                             # (1, B)

    contr = 0.5 * (jnp.sum(ce_img, axis=0, keepdims=True)
                   + jnp.sum(ce_txt, axis=1, keepdims=True)) * (1.0 / n)   # (1, 1)

    # Entailment geometry: oxy_angle(text, image) and half_aperture(text) ratios.
    xy = jnp.sum(txt * img, axis=-1, keepdims=True)
    c_xyl = curv * (xy - txt_time * img_time)                           # (B, 1)
    acos_numer = img_time + c_xyl * txt_time
    txt_norm = jnp.sqrt(txt_sq)
    acos_denom = txt_norm * jnp.sqrt(jnp.maximum(c_xyl * c_xyl - 1.0, 0.0))
    acos_ratio = jnp.clip(acos_numer / (acos_denom + EPS), -1.0 + EPS, 1.0 - EPS)
    asin_in = jnp.clip((2.0 * 0.1) / (txt_norm * sqrt_curv + EPS),      # min_radius = 0.1
                       -1.0 + EPS, 1.0 - EPS)

    # Single lane-dense (B, 128) output: lane0 acos ratio, lane1 asin input,
    # lane2 contrastive loss (already reduced in-kernel).
    lane = jax.lax.broadcasted_iota(jnp.int32, (n, 128), 1)
    packed = jnp.where(lane == 0, jnp.broadcast_to(acos_ratio, (n, 128)),
             jnp.where(lane == 1, jnp.broadcast_to(asin_in, (n, 128)),
                       jnp.broadcast_to(contr, (n, 128))))
    out_ref[...] = packed


def meru_fused_call(scalars, eos_tok, eos_idx, pix_flat, w_vis_scaled, vis_bias,
                    token_emb, pos_emb, w_txt_mix, w_proj):
    b = pix_flat.shape[0]
    kd = C * H * W
    flops = 2 * (b * kd * VIS_WIDTH          # visual encoder
                 + b * VOCAB * TXT_WIDTH     # one-hot token gather
                 + b * CTX_LEN * TXT_WIDTH   # one-hot position gather
                 + b * TXT_WIDTH * TXT_WIDTH         # text mix
                 + 2 * b * TXT_WIDTH * TXT_WIDTH     # merged projections
                 + b * b * 2 * EMBED_DIM)            # Lorentz pairwise
    bytes_accessed = (pix_flat.size * 4 + w_vis_scaled.size * 2 + vis_bias.size * 4
                      + token_emb.size * 2 + pos_emb.size * 2 + w_txt_mix.size * 2
                      + w_proj.size * 2 + eos_tok.size * 4 + eos_idx.size * 4
                      + scalars.size * 4 + b * 128 * 4)
    return pl.pallas_call(
        _meru_fused_kernel,
        out_shape=jax.ShapeDtypeStruct((b, 128), jnp.float32),
        in_specs=[
            pl.BlockSpec(memory_space=_SMEM),   # scalar params
            pl.BlockSpec(memory_space=_VMEM),   # eos token ids (B,1) int32
            pl.BlockSpec(memory_space=_VMEM),   # eos positions (B,1) int32
            pl.BlockSpec(memory_space=_VMEM),   # flat raw pixels (B, C*H*W)
            pl.BlockSpec(memory_space=pl.ANY),  # visual encoder weight (HBM, manual DMA)
            pl.BlockSpec(memory_space=_VMEM),   # folded pixel-norm bias (1, 128)
            pl.BlockSpec(memory_space=_VMEM),   # token embedding table (bf16)
            pl.BlockSpec(memory_space=_VMEM),   # positional embedding table (bf16)
            pl.BlockSpec(memory_space=_VMEM),   # text mix weight (bf16)
            pl.BlockSpec(memory_space=_VMEM),   # fused [vis|txt] projection weight (bf16)
        ],
        out_specs=pl.BlockSpec(memory_space=_VMEM),
        scratch_shapes=[
            pltpu.VMEM((C * H * W, VIS_WIDTH), jnp.bfloat16),  # visual weight landing pad
            pltpu.SemaphoreType.DMA,                           # its DMA semaphore
        ],
        cost_estimate=pl.CostEstimate(flops=flops,
                                      transcendentals=6 * b * b + 32 * b,
                                      bytes_accessed=bytes_accessed),
    )(scalars, eos_tok, eos_idx, pix_flat, w_vis_scaled, vis_bias,
      token_emb, pos_emb, w_txt_mix, w_proj)


# ---------------- parameters ----------------
def init_params(key):
    ks = jax.random.split(key, 6)
    # stand-in visual encoder: linear over flattened normalized pixels
    w_vis_enc = jax.random.normal(ks[0], (C * H * W, VIS_WIDTH), jnp.float32) * (C * H * W) ** -0.5
    # stand-in textual encoder: token + positional embeddings + per-token linear
    token_emb = jax.random.normal(ks[1], (VOCAB, TXT_WIDTH), jnp.float32) * 0.02
    pos_emb = jax.random.normal(ks[2], (CTX_LEN, TXT_WIDTH), jnp.float32) * 0.01
    w_txt_mix = jax.random.normal(ks[3], (TXT_WIDTH, TXT_WIDTH), jnp.float32) * TXT_WIDTH ** -0.5
    # MERU / CLIPBaseline parameters (proj weights stored already transposed: (width, embed_dim))
    w_vis_proj = jax.random.normal(ks[4], (VIS_WIDTH, EMBED_DIM), jnp.float32) * VIS_WIDTH ** -0.5
    w_txt_proj = jax.random.normal(ks[5], (TXT_WIDTH, EMBED_DIM), jnp.float32) * TXT_WIDTH ** -0.5

    # Fold ImageNet pixel normalization into the (linear) visual encoder:
    #   (x - mean) * istd @ W  ==  x @ (diag(istd) @ W) + (-(mean*istd) @ W)
    istd_flat = jnp.repeat(1.0 / PIXEL_STD, H * W)            # (C*H*W,)
    mean_flat = jnp.repeat(PIXEL_MEAN, H * W)                  # (C*H*W,)
    w_vis_scaled = w_vis_enc * istd_flat[:, None]
    vis_bias = (-(mean_flat * istd_flat))[None, :] @ w_vis_enc   # (1, VIS_WIDTH)

    p = {
        # bf16 weights in HBM -> half the weight DMA bytes; MXU-native inputs.
        "w_vis_enc_scaled": w_vis_scaled.astype(jnp.bfloat16),
        "vis_bias": vis_bias.astype(jnp.float32),
        "token_emb": token_emb.astype(jnp.bfloat16),
        "pos_emb": pos_emb.astype(jnp.bfloat16),
        "w_txt_mix": w_txt_mix.astype(jnp.bfloat16),
        # merged projection weight: columns 0:D -> visual proj, D:2D -> textual proj
        "w_proj": jnp.concatenate([w_vis_proj, w_txt_proj], axis=1).astype(jnp.bfloat16),
        "logit_scale": jnp.asarray(math.log(1.0 / 0.07), jnp.float32),
        "curv": jnp.asarray(math.log(CURV_INIT), jnp.float32),
        "visual_alpha": jnp.asarray(math.log(EMBED_DIM ** -0.5), jnp.float32),
        "textual_alpha": jnp.asarray(math.log(EMBED_DIM ** -0.5), jnp.float32),
    }
    return p


# ---------------- forward ----------------
@jax.jit
def meru_forward(params, images, tokens):
    b = images.shape[0]

    # Parameter clamping / exponentials (MERU.forward preamble) - scalar XLA glue.
    curv = jnp.exp(jnp.clip(params["curv"],
                            math.log(CURV_INIT / 10.0), math.log(CURV_INIT * 10.0)))
    v_alpha = jnp.exp(jnp.minimum(params["visual_alpha"], 0.0))
    t_alpha = jnp.exp(jnp.minimum(params["textual_alpha"], 0.0))
    scale = jnp.exp(jnp.minimum(params["logit_scale"], 4.6052))
    scalars = jnp.stack([v_alpha, t_alpha, curv, 1.0 / curv,
                         jnp.sqrt(curv), scale]).astype(jnp.float32)

    # Raw flattened pixels; normalization is folded into the encoder weight/bias.
    pix_flat = images.reshape(b, C * H * W)

    # EOS selection indices (tokens.argmax(dim=-1)); the token AT that position
    # is the max token, so no extra gather is needed here.
    eos_idx = jnp.argmax(tokens, axis=-1).astype(jnp.int32).reshape(b, 1)
    eos_tok = jnp.max(tokens, axis=-1).astype(jnp.int32).reshape(b, 1)

    packed = meru_fused_call(
        scalars, eos_tok, eos_idx, pix_flat,
        params["w_vis_enc_scaled"], params["vis_bias"],
        params["token_emb"], params["pos_emb"],
        params["w_txt_mix"], params["w_proj"])

    acos_ratio = packed[:, 0]
    asin_in = packed[:, 1]
    contrastive_loss = packed[0, 2]

    # TODO(synk): arccos/arcsin have no clean Mosaic lowering; clamped ratios are
    # produced in-kernel and the tiny (B,)-sized trig + mean is done in glue.
    angle = jnp.arccos(acos_ratio)
    aperture = jnp.arcsin(asin_in)
    entailment_loss = jnp.mean(jnp.maximum(angle - aperture, 0.0))

    loss = contrastive_loss
    if ENTAIL_WEIGHT > 0:
        loss = loss + ENTAIL_WEIGHT * entailment_loss
    return {
        "loss": loss,
        "logging": {
            "contrastive_loss": contrastive_loss,
            "entailment_loss": entailment_loss,
            "logit_scale": scale,
            "curv": curv,
        },
    }


if __name__ == "__main__":
    key = jax.random.PRNGKey(0)
    k_param, k_img, k_tok = jax.random.split(key, 3)
    params = init_params(k_param)
    images = jax.random.uniform(k_img, (B, C, H, W), jnp.float32)       # pixels in [0, 1], NCHW
    tokens = jax.random.randint(k_tok, (B, SEQ_LEN), 1, VOCAB, dtype=jnp.int32)

    out = meru_forward(params, images, tokens)
    out = jax.block_until_ready(out)
    print("KERNEL_OK")
</pallas_src>

<mosaic_0001>
module attributes {stable_mosaic.version = 11 : i64} {
  func.func @_meru_fused_kernel(%arg0: memref<6xf32, #tpu.memory_space<smem>>, %arg1: memref<8x1xi32, #tpu.memory_space<vmem>>, %arg2: memref<8x1xi32, #tpu.memory_space<vmem>>, %arg3: memref<8x768xf32, #tpu.memory_space<vmem>>, %arg4: memref<768x128xbf16, #tpu.memory_space<any>>, %arg5: memref<1x128xf32, #tpu.memory_space<vmem>>, %arg6: memref<64x128xbf16, #tpu.memory_space<vmem>>, %arg7: memref<16x128xbf16, #tpu.memory_space<vmem>>, %arg8: memref<128x128xbf16, #tpu.memory_space<vmem>>, %arg9: memref<128x128xbf16, #tpu.memory_space<vmem>>, %arg10: memref<8x128xf32, #tpu.memory_space<vmem>>, %arg11: memref<768x128xbf16, #tpu.memory_space<vmem>>, %arg12: memref<!tpu.dma_semaphore, #tpu.memory_space<semaphore_mem>>) attributes {dimension_semantics = [], scalar_prefetch = 0 : i64, scratch_operands = 2 : i64, tpu.core_type = #tpu.core_type<tc>} {
    tpu.enqueue_dma source(%arg4 : memref<768x128xbf16, #tpu.memory_space<any>>) target(%arg11 : memref<768x128xbf16, #tpu.memory_space<vmem>>) target_semaphore(%arg12 : memref<!tpu.dma_semaphore, #tpu.memory_space<semaphore_mem>>)
    %c0 = arith.constant 0 : index
    %0 = memref.load %arg0[%c0] : memref<6xf32, #tpu.memory_space<smem>>
    %c1 = arith.constant 1 : index
    %1 = memref.load %arg0[%c1] : memref<6xf32, #tpu.memory_space<smem>>
    %c2 = arith.constant 2 : index
    %2 = memref.load %arg0[%c2] : memref<6xf32, #tpu.memory_space<smem>>
    %c3 = arith.constant 3 : index
    %3 = memref.load %arg0[%c3] : memref<6xf32, #tpu.memory_space<smem>>
    %c4 = arith.constant 4 : index
    %4 = memref.load %arg0[%c4] : memref<6xf32, #tpu.memory_space<smem>>
    %c5 = arith.constant 5 : index
    %5 = memref.load %arg0[%c5] : memref<6xf32, #tpu.memory_space<smem>>
    %6 = tpu.iota {dimensions = array<i32: 1>} : vector<8x64xi32>
    %7 = tpu.iota {dimensions = array<i32: 1>} : vector<8x16xi32>
    %c0_0 = arith.constant 0 : index
    %c0_1 = arith.constant 0 : index
    %8 = vector.load %arg1[%c0_0, %c0_1] : memref<8x1xi32, #tpu.memory_space<vmem>>, vector<8x1xi32>
    %9 = vector.broadcast %8 : vector<8x1xi32> to vector<8x64xi32>
    %10 = arith.cmpi eq, %6, %9 : vector<8x64xi32>
    %11 = arith.extui %10 : vector<8x64xi1> to vector<8x64xi32>
    %12 = arith.sitofp %11 : vector<8x64xi32> to vector<8x64xf32>
    %13 = arith.truncf %12 : vector<8x64xf32> to vector<8x64xbf16>
    %c0_2 = arith.constant 0 : index
    %c0_3 = arith.constant 0 : index
    %14 = vector.load %arg2[%c0_2, %c0_3] : memref<8x1xi32, #tpu.memory_space<vmem>>, vector<8x1xi32>
    %15 = vector.broadcast %14 : vector<8x1xi32> to vector<8x16xi32>
    %16 = arith.cmpi eq, %7, %15 : vector<8x16xi32>
    %17 = arith.extui %16 : vector<8x16xi1> to vector<8x16xi32>
    %18 = arith.sitofp %17 : vector<8x16xi32> to vector<8x16xf32>
    %19 = arith.truncf %18 : vector<8x16xf32> to vector<8x16xbf16>
    %c0_4 = arith.constant 0 : index
    %c0_5 = arith.constant 0 : index
    %20 = vector.load %arg6[%c0_4, %c0_5] : memref<64x128xbf16, #tpu.memory_space<vmem>>, vector<64x128xbf16>
    %cst = arith.constant dense<0.000000e+00> : vector<8x128xf32>
    %21 = tpu.matmul %13, %20, %cst {dimension_numbers = #tpu.dot_dimension_numbers<[1], [0], [0], [1], [0, 0, 1, 1], [], []>} : vector<8x64xbf16>, vector<64x128xbf16>, vector<8x128xf32> -> vector<8x128xf32>
    %c0_6 = arith.constant 0 : index
    %c0_7 = arith.constant 0 : index
    %22 = vector.load %arg7[%c0_6, %c0_7] : memref<16x128xbf16, #tpu.memory_space<vmem>>, vector<16x128xbf16>
    %cst_8 = arith.constant dense<0.000000e+00> : vector<8x128xf32>
    %23 = tpu.matmul %19, %22, %cst_8 {dimension_numbers = #tpu.dot_dimension_numbers<[1], [0], [0], [1], [0, 0, 1, 1], [], []>} : vector<8x16xbf16>, vector<16x128xbf16>, vector<8x128xf32> -> vector<8x128xf32>
    %24 = arith.addf %21, %23 : vector<8x128xf32>
    %25 = arith.truncf %24 : vector<8x128xf32> to vector<8x128xbf16>
    %c0_9 = arith.constant 0 : index
    %c0_10 = arith.constant 0 : index
    %26 = vector.load %arg8[%c0_9, %c0_10] : memref<128x128xbf16, #tpu.memory_space<vmem>>, vector<128x128xbf16>
    %cst_11 = arith.constant dense<0.000000e+00> : vector<8x128xf32>
    %27 = tpu.matmul %25, %26, %cst_11 {dimension_numbers = #tpu.dot_dimension_numbers<[1], [0], [0], [1], [0, 0, 1, 1], [], []>} : vector<8x128xbf16>, vector<128x128xbf16>, vector<8x128xf32> -> vector<8x128xf32>
    tpu.wait_dma2 semaphore(%arg12 : memref<!tpu.dma_semaphore, #tpu.memory_space<semaphore_mem>>) src(%arg4 : memref<768x128xbf16, #tpu.memory_space<any>>) dst(%arg11 : memref<768x128xbf16, #tpu.memory_space<vmem>>)
    %c0_12 = arith.constant 0 : index
    %c0_13 = arith.constant 0 : index
    %28 = vector.load %arg3[%c0_12, %c0_13] : memref<8x768xf32, #tpu.memory_space<vmem>>, vector<8x768xf32>
    %29 = arith.truncf %28 : vector<8x768xf32> to vector<8x768xbf16>
    %c0_14 = arith.constant 0 : index
    %c0_15 = arith.constant 0 : index
    %30 = vector.load %arg11[%c0_14, %c0_15] : memref<768x128xbf16, #tpu.memory_space<vmem>>, vector<768x128xbf16>
    %cst_16 = arith.constant dense<0.000000e+00> : vector<8x128xf32>
    %31 = tpu.matmul %29, %30, %cst_16 {dimension_numbers = #tpu.dot_dimension_numbers<[1], [0], [0], [1], [0, 0, 1, 1], [], []>} : vector<8x768xbf16>, vector<768x128xbf16>, vector<8x128xf32> -> vector<8x128xf32>
    %c0_17 = arith.constant 0 : index
    %c0_18 = arith.constant 0 : index
    %32 = vector.load %arg5[%c0_17, %c0_18] : memref<1x128xf32, #tpu.memory_space<vmem>>, vector<1x128xf32>
    %33 = vector.broadcast %32 : vector<1x128xf32> to vector<8x128xf32>
    %34 = arith.addf %31, %33 : vector<8x128xf32>
    %35 = tpu.concatenate %34, %27 in 0 : vector<8x128xf32>, vector<8x128xf32> -> vector<16x128xf32>
    %36 = arith.truncf %35 : vector<16x128xf32> to vector<16x128xbf16>
    %c0_19 = arith.constant 0 : index
    %c0_20 = arith.constant 0 : index
    %37 = vector.load %arg9[%c0_19, %c0_20] : memref<128x128xbf16, #tpu.memory_space<vmem>>, vector<128x128xbf16>
    %cst_21 = arith.constant dense<0.000000e+00> : vector<16x128xf32>
    %38 = tpu.matmul %36, %37, %cst_21 {dimension_numbers = #tpu.dot_dimension_numbers<[1], [0], [0], [1], [0, 0, 1, 1], [], []>} : vector<16x128xbf16>, vector<128x128xbf16>, vector<16x128xf32> -> vector<16x128xf32>
    %39 = vector.extract_strided_slice %38 {offsets = [0, 0], sizes = [8, 64], strides = [1, 1]} : vector<16x128xf32> to vector<8x64xf32>
    %40 = vector.broadcast %0 : f32 to vector<8x64xf32>
    %41 = arith.mulf %39, %40 : vector<8x64xf32>
    %42 = vector.extract_strided_slice %38 {offsets = [8, 64], sizes = [8, 64], strides = [1, 1]} : vector<16x128xf32> to vector<8x64xf32>
    %43 = vector.broadcast %1 : f32 to vector<8x64xf32>
    %44 = arith.mulf %42, %43 : vector<8x64xf32>
    %45 = arith.mulf %41, %41 : vector<8x64xf32>
    %cst_22 = arith.constant dense<0.000000e+00> : vector<8xf32>
    %46 = vector.multi_reduction <add>, %45, %cst_22 [1] : vector<8x64xf32> to vector<8xf32>
    %47 = vector.shape_cast %46 : vector<8xf32> to vector<8x1xf32>
    %48 = vector.broadcast %2 : f32 to vector<8x1xf32>
    %49 = arith.mulf %48, %47 : vector<8x1xf32>
    %50 = math.sqrt %49 : vector<8x1xf32>
    %cst_23 = arith.constant 9.99999993E-9 : f32
    %cst_24 = arith.constant 11.0903549 : f32
    %51 = vector.broadcast %cst_23 : f32 to vector<8x1xf32>
    %52 = arith.maximumf %51, %50 : vector<8x1xf32>
    %53 = vector.broadcast %cst_24 : f32 to vector<8x1xf32>
    %54 = arith.minimumf %53, %52 : vector<8x1xf32>
    %55 = math.exp %54 : vector<8x1xf32>
    %cst_25 = arith.constant 0.000000e+00 : f32
    %56 = vector.broadcast %cst_25 : f32 to vector<8x1xf32>
    %57 = arith.subf %56, %54 : vector<8x1xf32>
    %58 = math.exp %57 : vector<8x1xf32>
    %59 = arith.subf %55, %58 : vector<8x1xf32>
    %cst_26 = arith.constant 5.000000e-01 : f32
    %60 = vector.broadcast %cst_26 : f32 to vector<8x1xf32>
    %61 = arith.mulf %60, %59 : vector<8x1xf32>
    %62 = vector.broadcast %61 : vector<8x1xf32> to vector<8x64xf32>
    %63 = arith.mulf %62, %41 : vector<8x64xf32>
    %cst_27 = arith.constant 9.99999993E-9 : f32
    %64 = vector.broadcast %cst_27 : f32 to vector<8x1xf32>
    %65 = arith.maximumf %50, %64 : vector<8x1xf32>
    %66 = vector.broadcast %65 : vector<8x1xf32> to vector<8x64xf32>
    %67 = arith.divf %63, %66 : vector<8x64xf32>
    %68 = arith.mulf %44, %44 : vector<8x64xf32>
    %cst_28 = arith.constant dense<0.000000e+00> : vector<8xf32>
    %69 = vector.multi_reduction <add>, %68, %cst_28 [1] : vector<8x64xf32> to vector<8xf32>
    %70 = vector.shape_cast %69 : vector<8xf32> to vector<8x1xf32>
    %71 = vector.broadcast %2 : f32 to vector<8x1xf32>
    %72 = arith.mulf %71, %70 : vector<8x1xf32>
    %73 = math.sqrt %72 : vector<8x1xf32>
    %cst_29 = arith.constant 9.99999993E-9 : f32
    %cst_30 = arith.constant 11.0903549 : f32
    %74 = vector.broadcast %cst_29 : f32 to vector<8x1xf32>
    %75 = arith.maximumf %74, %73 : vector<8x1xf32>
    %76 = vector.broadcast %cst_30 : f32 to vector<8x1xf32>
    %77 = arith.minimumf %76, %75 : vector<8x1xf32>
    %78 = math.exp %77 : vector<8x1xf32>
    %cst_31 = arith.constant 0.000000e+00 : f32
    %79 = vector.broadcast %cst_31 : f32 to vector<8x1xf32>
    %80 = arith.subf %79, %77 : vector<8x1xf32>
    %81 = math.exp %80 : vector<8x1xf32>
    %82 = arith.subf %78, %81 : vector<8x1xf32>
    %cst_32 = arith.constant 5.000000e-01 : f32
    %83 = vector.broadcast %cst_32 : f32 to vector<8x1xf32>
    %84 = arith.mulf %83, %82 : vector<8x1xf32>
    %85 = vector.broadcast %84 : vector<8x1xf32> to vector<8x64xf32>
    %86 = arith.mulf %85, %44 : vector<8x64xf32>
    %cst_33 = arith.constant 9.99999993E-9 : f32
    %87 = vector.broadcast %cst_33 : f32 to vector<8x1xf32>
    %88 = arith.maximumf %73, %87 : vector<8x1xf32>
    %89 = vector.broadcast %88 : vector<8x1xf32> to vector<8x64xf32>
    %90 = arith.divf %86, %89 : vector<8x64xf32>
    %91 = arith.mulf %67, %67 : vector<8x64xf32>
    %cst_34 = arith.constant dense<0.000000e+00> : vector<8xf32>
    %92 = vector.multi_reduction <add>, %91, %cst_34 [1] : vector<8x64xf32> to vector<8xf32>
    %93 = vector.shape_cast %92 : vector<8xf32> to vector<8x1xf32>
    %94 = arith.mulf %90, %90 : vector<8x64xf32>
    %cst_35 = arith.constant dense<0.000000e+00> : vector<8xf32>
    %95 = vector.multi_reduction <add>, %94, %cst_35 [1] : vector<8x64xf32> to vector<8xf32>
    %96 = vector.shape_cast %95 : vector<8xf32> to vector<8x1xf32>
    %97 = vector.broadcast %3 : f32 to vector<8x1xf32>
    %98 = arith.addf %97, %93 : vector<8x1xf32>
    %99 = math.sqrt %98 : vector<8x1xf32>
    %100 = vector.broadcast %3 : f32 to vector<8x1xf32>
    %101 = arith.addf %100, %96 : vector<8x1xf32>
    %102 = math.sqrt %101 : vector<8x1xf32>
    %103 = tpu.iota {dimensions = array<i32: 1>} : vector<8x64xi32>
    %c0_i32 = arith.constant 0 : i32
    %104 = vector.broadcast %c0_i32 : i32 to vector<8x64xi32>
    %105 = arith.cmpi eq, %103, %104 : vector<8x64xi32>
    %cst_36 = arith.constant 0.000000e+00 : f32
    %106 = vector.shape_cast %99 : vector<8x1xf32> to vector<8x1xf32>
    %107 = vector.broadcast %106 : vector<8x1xf32> to vector<8x64xf32>
    %108 = vector.broadcast %cst_36 : f32 to vector<8x64xf32>
    %109 = arith.select %105, %107, %108 : vector<8x64xi1>, vector<8x64xf32>
    %110 = tpu.concatenate %67, %109 in 1 : vector<8x64xf32>, vector<8x64xf32> -> vector<8x128xf32>
    %c0_i32_37 = arith.constant 0 : i32
    %111 = vector.broadcast %c0_i32_37 : i32 to vector<8x64xi32>
    %112 = arith.cmpi eq, %103, %111 : vector<8x64xi32>
    %cst_38 = arith.constant 0.000000e+00 : f32
    %113 = vector.broadcast %cst_38 : f32 to vector<8x1xf32>
    %114 = arith.subf %113, %102 : vector<8x1xf32>
    %cst_39 = arith.constant 0.000000e+00 : f32
    %115 = vector.shape_cast %114 : vector<8x1xf32> to vector<8x1xf32>
    %116 = vector.broadcast %115 : vector<8x1xf32> to vector<8x64xf32>
    %117 = vector.broadcast %cst_39 : f32 to vector<8x64xf32>
    %118 = arith.select %112, %116, %117 : vector<8x64xi1>, vector<8x64xf32>
    %119 = tpu.concatenate %90, %118 in 1 : vector<8x64xf32>, vector<8x64xf32> -> vector<8x128xf32>
    %cst_40 = arith.constant dense<0.000000e+00> : vector<8x8xf32>
    %120 = tpu.matmul %110, %119, %cst_40 {dimension_numbers = #tpu.dot_dimension_numbers<[1], [1], [0], [0], [0, 0, 1, 0], [], []>} : vector<8x128xf32>, vector<8x128xf32>, vector<8x8xf32> -> vector<8x8xf32>
    %cst_41 = arith.constant 0.000000e+00 : f32
    %121 = arith.subf %cst_41, %2 : f32
    %122 = vector.broadcast %121 : f32 to vector<8x8xf32>
    %123 = arith.mulf %122, %120 : vector<8x8xf32>
    %cst_42 = arith.constant 1.000000e+00 : f32
    %124 = vector.broadcast %cst_42 : f32 to vector<8x8xf32>
    %125 = arith.subf %123, %124 : vector<8x8xf32>
    %cst_43 = arith.constant 9.99999993E-9 : f32
    %126 = vector.broadcast %cst_43 : f32 to vector<8x8xf32>
    %127 = arith.maximumf %125, %126 : vector<8x8xf32>
    %cst_44 = arith.constant 1.000000e+00 : f32
    %128 = vector.broadcast %cst_44 : f32 to vector<8x8xf32>
    %129 = arith.addf %128, %127 : vector<8x8xf32>
    %cst_45 = arith.constant 2.000000e+00 : f32
    %130 = vector.broadcast %cst_45 : f32 to vector<8x8xf32>
    %131 = arith.addf %127, %130 : vector<8x8xf32>
    %132 = arith.mulf %127, %131 : vector<8x8xf32>
    %133 = math.sqrt %132 : vector<8x8xf32>
    %134 = arith.addf %129, %133 : vector<8x8xf32>
    %135 = math.log %134 : vector<8x8xf32>
    %136 = vector.broadcast %4 : f32 to vector<8x8xf32>
    %137 = arith.divf %135, %136 : vector<8x8xf32>
    %cst_46 = arith.constant 0.000000e+00 : f32
    %138 = vector.broadcast %cst_46 : f32 to vector<8x8xf32>
    %139 = arith.subf %138, %137 : vector<8x8xf32>
    %140 = vector.broadcast %5 : f32 to vector<8x8xf32>
    %141 = arith.mulf %140, %139 : vector<8x8xf32>
    %142 = tpu.iota {dimensions = array<i32: 0>} : vector<8x8xi32>
    %143 = tpu.iota {dimensions = array<i32: 1>} : vector<8x8xi32>
    %144 = arith.cmpi eq, %142, %143 : vector<8x8xi32>
    %145 = arith.extui %144 : vector<8x8xi1> to vector<8x8xi32>
    %146 = arith.sitofp %145 : vector<8x8xi32> to vector<8x8xf32>
    %147 = arith.mulf %141, %146 : vector<8x8xf32>
    %cst_47 = arith.constant dense<0.000000e+00> : vector<8xf32>
    %148 = vector.multi_reduction <add>, %147, %cst_47 [1] : vector<8x8xf32> to vector<8xf32>
    %149 = vector.shape_cast %148 : vector<8xf32> to vector<8x1xf32>
    %150 = arith.mulf %141, %146 : vector<8x8xf32>
    %cst_48 = arith.constant dense<0.000000e+00> : vector<8xf32>
    %151 = vector.multi_reduction <add>, %150, %cst_48 [0] : vector<8x8xf32> to vector<8xf32>
    %152 = vector.shape_cast %151 : vector<8xf32> to vector<1x8xf32>
    %cst_49 = arith.constant dense<0xFF800000> : vector<8xf32>
    %153 = vector.multi_reduction <maximumf>, %141, %cst_49 [1] : vector<8x8xf32> to vector<8xf32>
    %154 = vector.shape_cast %153 : vector<8xf32> to vector<8x1xf32>
    %155 = vector.broadcast %154 : vector<8x1xf32> to vector<8x8xf32>
    %156 = arith.subf %141, %155 : vector<8x8xf32>
    %157 = math.exp %156 : vector<8x8xf32>
    %cst_50 = arith.constant dense<0.000000e+00> : vector<8xf32>
    %158 = vector.multi_reduction <add>, %157, %cst_50 [1] : vector<8x8xf32> to vector<8xf32>
    %159 = vector.shape_cast %158 : vector<8xf32> to vector<8x1xf32>
    %160 = math.log %159 : vector<8x1xf32>
    %161 = arith.addf %154, %160 : vector<8x1xf32>
    %162 = arith.subf %161, %149 : vector<8x1xf32>
    %cst_51 = arith.constant dense<0xFF800000> : vector<8xf32>
    %163 = vector.multi_reduction <maximumf>, %141, %cst_51 [0] : vector<8x8xf32> to vector<8xf32>
    %164 = vector.shape_cast %163 : vector<8xf32> to vector<1x8xf32>
    %165 = vector.broadcast %164 : vector<1x8xf32> to vector<8x8xf32>
    %166 = arith.subf %141, %165 : vector<8x8xf32>
    %167 = math.exp %166 : vector<8x8xf32>
    %cst_52 = arith.constant dense<0.000000e+00> : vector<8xf32>
    %168 = vector.multi_reduction <add>, %167, %cst_52 [0] : vector<8x8xf32> to vector<8xf32>
    %169 = vector.shape_cast %168 : vector<8xf32> to vector<1x8xf32>
    %170 = math.log %169 : vector<1x8xf32>
    %171 = arith.addf %164, %170 : vector<1x8xf32>
    %172 = arith.subf %171, %152 : vector<1x8xf32>
    %cst_53 = arith.constant dense<0.000000e+00> : vector<1xf32>
    %173 = vector.multi_reduction <add>, %162, %cst_53 [0] : vector<8x1xf32> to vector<1xf32>
    %174 = vector.shape_cast %173 : vector<1xf32> to vector<1x1xf32>
    %cst_54 = arith.constant dense<0.000000e+00> : vector<1xf32>
    %175 = vector.multi_reduction <add>, %172, %cst_54 [1] : vector<1x8xf32> to vector<1xf32>
    %176 = vector.shape_cast %175 : vector<1xf32> to vector<1x1xf32>
    %177 = arith.addf %174, %176 : vector<1x1xf32>
    %cst_55 = arith.constant 5.000000e-01 : f32
    %178 = vector.broadcast %cst_55 : f32 to vector<1x1xf32>
    %179 = arith.mulf %178, %177 : vector<1x1xf32>
    %cst_56 = arith.constant 1.250000e-01 : f32
    %180 = vector.broadcast %cst_56 : f32 to vector<1x1xf32>
    %181 = arith.mulf %179, %180 : vector<1x1xf32>
    %182 = arith.mulf %90, %67 : vector<8x64xf32>
    %cst_57 = arith.constant dense<0.000000e+00> : vector<8xf32>
    %183 = vector.multi_reduction <add>, %182, %cst_57 [1] : vector<8x64xf32> to vector<8xf32>
    %184 = vector.shape_cast %183 : vector<8xf32> to vector<8x1xf32>
    %185 = arith.mulf %102, %99 : vector<8x1xf32>
    %186 = arith.subf %184, %185 : vector<8x1xf32>
    %187 = vector.broadcast %2 : f32 to vector<8x1xf32>
    %188 = arith.mulf %187, %186 : vector<8x1xf32>
    %189 = arith.mulf %188, %102 : vector<8x1xf32>
    %190 = arith.addf %99, %189 : vector<8x1xf32>
    %191 = math.sqrt %96 : vector<8x1xf32>
    %192 = arith.mulf %188, %188 : vector<8x1xf32>
    %cst_58 = arith.constant 1.000000e+00 : f32
    %193 = vector.broadcast %cst_58 : f32 to vector<8x1xf32>
    %194 = arith.subf %192, %193 : vector<8x1xf32>
    %cst_59 = arith.constant 0.000000e+00 : f32
    %195 = vector.broadcast %cst_59 : f32 to vector<8x1xf32>
    %196 = arith.maximumf %194, %195 : vector<8x1xf32>
    %197 = math.sqrt %196 : vector<8x1xf32>
    %198 = arith.mulf %191, %197 : vector<8x1xf32>
    %cst_60 = arith.constant 9.99999993E-9 : f32
    %199 = vector.broadcast %cst_60 : f32 to vector<8x1xf32>
    %200 = arith.addf %198, %199 : vector<8x1xf32>
    %201 = arith.divf %190, %200 : vector<8x1xf32>
    %cst_61 = arith.constant -1.000000e+00 : f32
    %cst_62 = arith.constant 1.000000e+00 : f32
    %202 = vector.broadcast %cst_61 : f32 to vector<8x1xf32>
    %203 = arith.maximumf %202, %201 : vector<8x1xf32>
    %204 = vector.broadcast %cst_62 : f32 to vector<8x1xf32>
    %205 = arith.minimumf %204, %203 : vector<8x1xf32>
    %206 = vector.broadcast %4 : f32 to vector<8x1xf32>
    %207 = arith.mulf %191, %206 : vector<8x1xf32>
    %cst_63 = arith.constant 9.99999993E-9 : f32
    %208 = vector.broadcast %cst_63 : f32 to vector<8x1xf32>
    %209 = arith.addf %207, %208 : vector<8x1xf32>
    %cst_64 = arith.constant 2.000000e-01 : f32
    %210 = vector.broadcast %cst_64 : f32 to vector<8x1xf32>
    %211 = arith.divf %210, %209 : vector<8x1xf32>
    %cst_65 = arith.constant -1.000000e+00 : f32
    %cst_66 = arith.constant 1.000000e+00 : f32
    %212 = vector.broadcast %cst_65 : f32 to vector<8x1xf32>
    %213 = arith.maximumf %212, %211 : vector<8x1xf32>
    %214 = vector.broadcast %cst_66 : f32 to vector<8x1xf32>
    %215 = arith.minimumf %214, %213 : vector<8x1xf32>
    %216 = tpu.iota {dimensions = array<i32: 1>} : vector<8x128xi32>
    %c0_i32_67 = arith.constant 0 : i32
    %217 = vector.broadcast %c0_i32_67 : i32 to vector<8x128xi32>
    %218 = arith.cmpi eq, %216, %217 : vector<8x128xi32>
    %219 = vector.shape_cast %205 : vector<8x1xf32> to vector<8x1xf32>
    %220 = vector.broadcast %219 : vector<8x1xf32> to vector<8x128xf32>
    %c1_i32 = arith.constant 1 : i32
    %221 = vector.broadcast %c1_i32 : i32 to vector<8x128xi32>
    %222 = arith.cmpi eq, %216, %221 : vector<8x128xi32>
    %223 = vector.shape_cast %215 : vector<8x1xf32> to vector<8x1xf32>
    %224 = vector.broadcast %223 : vector<8x1xf32> to vector<8x128xf32>
    %225 = vector.shape_cast %181 : vector<1x1xf32> to vector<1x1xf32>
    %226 = vector.broadcast %225 : vector<1x1xf32> to vector<8x128xf32>
    %227 = arith.select %222, %224, %226 : vector<8x128xi1>, vector<8x128xf32>
    %228 = arith.select %218, %220, %227 : vector<8x128xi1>, vector<8x128xf32>
    %c0_68 = arith.constant 0 : index
    %c0_69 = arith.constant 0 : index
    %229 = vector.load %arg10[%c0_68, %c0_69] : memref<8x128xf32, #tpu.memory_space<vmem>>, vector<8x128xf32>
    tpu.vector_store %arg10[%c0_68, %c0_69], %228 {strides = array<i32>} : memref<8x128xf32, #tpu.memory_space<vmem>>, vector<8x128xf32>,
    return
  }
}

</mosaic_0001>

<llo_original>
// kernel: meru_forward.1
$region0: #{meru_forward.1}
  #allocation0 [shape = 'u32[]', space=smem, size = 0x4, offset = 0x4, fixed_abs, tag = 'smem constant byte address 0x4 - core index']
  #allocation1 [shape = 'u32[144,128]{1,0:T(1,128)}', space=vmem, size = 0x12000, scoped, tag = 'internal scratch']
  #allocation2 [shape = 'bf16[768,128]{1,0:T(16,128)(2,1)}', space=vmem, size = 0x30000, scoped, tag = 'scratch operand']
  #allocation3 [shape = 's32[1]{0}', space=sflag, size = 0x4, scoped, tag = 'scratch operand']
  #allocation6 [shape = 's32[]', space=sflag, size = 0x4, offset = 0, fixed_abs, tag = 'sflag constant byte address 0x0 - dummy sync flag']
  %s0 = inlined_call_operand.vmem [shape: f32[6], index: 0, kind: input, shape index: {}]
  %s1 = inlined_call_operand.vmem [shape: s32[8,1], index: 1, kind: input, shape index: {}]
  %s2 = inlined_call_operand.vmem [shape: s32[8,1], index: 2, kind: input, shape index: {}]
  %s3 = inlined_call_operand.vmem [shape: f32[8,768], index: 3, kind: input, shape index: {}]
  %s4 = inlined_call_operand.vmem [shape: bf16[768,128], index: 4, kind: input, shape index: {}]
  %s5 = inlined_call_operand.vmem [shape: f32[1,128], index: 5, kind: input, shape index: {}]
  %s6 = inlined_call_operand.vmem [shape: bf16[64,128], index: 6, kind: input, shape index: {}]
  %s7 = inlined_call_operand.vmem [shape: bf16[16,128], index: 7, kind: input, shape index: {}]
  %s8 = inlined_call_operand.vmem [shape: bf16[128,128], index: 8, kind: input, shape index: {}]
  %s9 = inlined_call_operand.vmem [shape: bf16[128,128], index: 9, kind: input, shape index: {}]
  %s10 = inlined_call_operand.vmem [shape: f32[8,128], index: 10, kind: output, shape index: {}]
  %s11 = sld [smem:[#allocation0]]
  $region84: #{meru_forward.1} parent=0
    _
  %s13 = ssub.s32 1, %s11
  %s14 = scalar_select 0, %s13, %s11
  $region1: #{meru_forward.1} parent=0
    #allocation4 [shape = 'u8[512]{0}', space=smem, size = 0x200, scoped, tag = 'input window, operand 0, single buffered']
    #allocation5 [shape = 's32[1]{0}', space=sflag, size = 0x4, scoped, tag = 'scoped memory for meru_forward.1']
    %15 = vsyncpa [#allocation5], 0
    // Predicated region
    $region2: #{meru_forward.1} parent=1 // pred_check
      _
    $region3: #{meru_forward.1} parent=1 // pred_check_branch
      %17 = sbr.rel (0) target = $region5
    $region4: #{meru_forward.1} parent=1 // pred_region
      %s19 = ssub.s32 16, 16
      %20 = vsyncadd [#allocation5], %s19
      %s22 = sshll.u32 %s0, 4
      %s23 = int_to_ptr.vmem [resolvable:$true] %s22
      %25 = dma.vmem_to_smem %s23, 16, [#allocation4], [#allocation5]
    $region5: #{meru_forward.1} parent=1 // pred_fallthru
      _
    // Predicated region
    $region6: #{meru_forward.1} parent=1 // pred_check
      _
    $region7: #{meru_forward.1} parent=1 // pred_check_branch
      %27 = sbr.rel (0) target = $region9
    $region8: #{meru_forward.1} parent=1 // pred_region
      _
    $region9: #{meru_forward.1} parent=1 // pred_fallthru
      _
    // Predicated region
    $region10: #{meru_forward.1} parent=1 // pred_check
      _
    $region11: #{meru_forward.1} parent=1 // pred_check_branch
      %29 = sbr.rel (0) target = $region13
    $region12: #{meru_forward.1} parent=1 // pred_region
      _
    $region13: #{meru_forward.1} parent=1 // pred_fallthru
      _
    // Predicated region
    $region14: #{meru_forward.1} parent=1 // pred_check
      _
    $region15: #{meru_forward.1} parent=1 // pred_check_branch
      %31 = sbr.rel (0) target = $region17
    $region16: #{meru_forward.1} parent=1 // pred_region
      _
    $region17: #{meru_forward.1} parent=1 // pred_fallthru
      _
    // Predicated region
    $region18: #{meru_forward.1} parent=1 // pred_check
      _
    $region19: #{meru_forward.1} parent=1 // pred_check_branch
      %33 = sbr.rel (0) target = $region21
    $region20: #{meru_forward.1} parent=1 // pred_region
      _
    $region21: #{meru_forward.1} parent=1 // pred_fallthru
      _
    // Predicated region
    $region22: #{meru_forward.1} parent=1 // pred_check
      _
    $region23: #{meru_forward.1} parent=1 // pred_check_branch
      %35 = sbr.rel (0) target = $region25
    $region24: #{meru_forward.1} parent=1 // pred_region
      _
    $region25: #{meru_forward.1} parent=1 // pred_fallthru
      _
    // Predicated region
    $region26: #{meru_forward.1} parent=1 // pred_check
      _
    $region27: #{meru_forward.1} parent=1 // pred_check_branch
      %37 = sbr.rel (0) target = $region29
    $region28: #{meru_forward.1} parent=1 // pred_region
      _
    $region29: #{meru_forward.1} parent=1 // pred_fallthru
      _
    // Predicated region
    $region30: #{meru_forward.1} parent=1 // pred_check
      _
    $region31: #{meru_forward.1} parent=1 // pred_check_branch
      %39 = sbr.rel (0) target = $region33
    $region32: #{meru_forward.1} parent=1 // pred_region
      _
    $region33: #{meru_forward.1} parent=1 // pred_fallthru
      _
    // Predicated region
    $region34: #{meru_forward.1} parent=1 // pred_check
      _
    $region35: #{meru_forward.1} parent=1 // pred_check_branch
      %41 = sbr.rel (0) target = $region37
    $region36: #{meru_forward.1} parent=1 // pred_region
      _
    $region37: #{meru_forward.1} parent=1 // pred_fallthru
      _
    // Predicated region
    $region38: #{meru_forward.1} parent=1 // pred_check
      _
    $region39: #{meru_forward.1} parent=1 // pred_check_branch
      %43 = sbr.rel (0) target = $region41
    $region40: #{meru_forward.1} parent=1 // pred_region
      %44 = dma.done [#allocation5], 16
    $region41: #{meru_forward.1} parent=1 // pred_fallthru
      _
    %45 = sfence
    %p48 = scmp.lt.u32.totalorder 384, 8
    %p49 = pneg %p48
    // Predicated region
    $region42: #{meru_forward.1} parent=1 // pred_check
      _
    $region43: #{meru_forward.1} parent=1 // pred_check_branch
      %51 = sbr.rel (%p48) target = $region45
    $region44: #{meru_forward.1} parent=1 // pred_region
      %s66 = sand.u32 384, 7
      %p67 = scmp.eq.s32.totalorder %s66, 0
      // Predicated region
      $region57: #{meru_forward.1} parent=44 // pred_check
        %p68 = pneg %p67
      $region58: #{meru_forward.1} parent=44 // pred_check_branch
        %70 = sbr.rel (%p68) target = $region60
      $region59: #{meru_forward.1} parent=44 // pred_region
        loop: start=0, step=1, limit=1
        $region61: #{meru_forward.1} parent=59 // loop_pre_header
          _
        $region62: #{meru_forward.1} parent=59 // loop_header
          %s72 = sphi 0, %s76
          %p73 = scmp.ge.s32.totalorder %s72, 1
          %s77 = sphi %s4, %s4
          %s78 = sphi [#allocation2], [#allocation2]
        $region63: #{meru_forward.1} parent=59 // loop_header_branch
          %75 = sbr.rel (%p73) target = $region67
        $region64: #{meru_forward.1} parent=59 // loop_body
          %v79 = vld [vmem:[%s77] sm:$0xff]
          %80 = vst [vmem:[%s78] sm:$0xff] %v79
          %v81 = vld [vmem:[%s77 + $0x8] sm:$0xff]
          %82 = vst [vmem:[%s78 + $0x8] sm:$0xff] %v81
          %v83 = vld [vmem:[%s77 + $0x10] sm:$0xff]
          %84 = vst [vmem:[%s78 + $0x10] sm:$0xff] %v83
          %v85 = vld [vmem:[%s77 + $0x18] sm:$0xff]
          %86 = vst [vmem:[%s78 + $0x18] sm:$0xff] %v85
          %v87 = vld [vmem:[%s77 + $0x20] sm:$0xff]
          %88 = vst [vmem:[%s78 + $0x20] sm:$0xff] %v87
          %v89 = vld [vmem:[%s77 + $0x28] sm:$0xff]
          %90 = vst [vmem:[%s78 + $0x28] sm:$0xff] %v89
          %v91 = vld [vmem:[%s77 + $0x30] sm:$0xff]
          %92 = vst [vmem:[%s78 + $0x30] sm:$0xff] %v91
          %v93 = vld [vmem:[%s77 + $0x38] sm:$0xff]
          %94 = vst [vmem:[%s78 + $0x38] sm:$0xff] %v93
          %v95 = vld [vmem:[%s77 + $0x40] sm:$0xff]
          %96 = vst [vmem:[%s78 + $0x40] sm:$0xff] %v95
          %v97 = vld [vmem:[%s77 + $0x48] sm:$0xff]
          %98 = vst [vmem:[%s78 + $0x48] sm:$0xff] %v97
          %v99 = vld [vmem:[%s77 + $0x50] sm:$0xff]
          %100 = vst [vmem:[%s78 + $0x50] sm:$0xff] %v99
          %v101 = vld [vmem:[%s77 + $0x58] sm:$0xff]
          %102 = vst [vmem:[%s78 + $0x58] sm:$0xff] %v101
          %v103 = vld [vmem:[%s77 + $0x60] sm:$0xff]
          %104 = vst [vmem:[%s78 + $0x60] sm:$0xff] %v103
          %v105 = vld [vmem:[%s77 + $0x68] sm:$0xff]
          %106 = vst [vmem:[%s78 + $0x68] sm:$0xff] %v105
          %v107 = vld [vmem:[%s77 + $0x70] sm:$0xff]
          %108 = vst [vmem:[%s78 + $0x70] sm:$0xff] %v107
          %v109 = vld [vmem:[%s77 + $0x78] sm:$0xff]
          %110 = vst [vmem:[%s78 + $0x78] sm:$0xff] %v109
          %v111 = vld [vmem:[%s77 + $0x80] sm:$0xff]
          %112 = vst [vmem:[%s78 + $0x80] sm:$0xff] %v111
          %v113 = vld [vmem:[%s77 + $0x88] sm:$0xff]
          %114 = vst [vmem:[%s78 + $0x88] sm:$0xff] %v113
          %v115 = vld [vmem:[%s77 + $0x90] sm:$0xff]
          %116 = vst [vmem:[%s78 + $0x90] sm:$0xff] %v115
          %v117 = vld [vmem:[%s77 + $0x98] sm:$0xff]
          %118 = vst [vmem:[%s78 + $0x98] sm:$0xff] %v117
          %v119 = vld [vmem:[%s77 + $0xa0] sm:$0xff]
          %120 = vst [vmem:[%s78 + $0xa0] sm:$0xff] %v119
          %v121 = vld [vmem:[%s77 + $0xa8] sm:$0xff]
          %122 = vst [vmem:[%s78 + $0xa8] sm:$0xff] %v121
          %v123 = vld [vmem:[%s77 + $0xb0] sm:$0xff]
          %124 = vst [vmem:[%s78 + $0xb0] sm:$0xff] %v123
          %v125 = vld [vmem:[%s77 + $0xb8] sm:$0xff]
          %126 = vst [vmem:[%s78 + $0xb8] sm:$0xff] %v125
          %v127 = vld [vmem:[%s77 + $0xc0] sm:$0xff]
          %128 = vst [vmem:[%s78 + $0xc0] sm:$0xff] %v127
          %v129 = vld [vmem:[%s77 + $0xc8] sm:$0xff]
          %130 = vst [vmem:[%s78 + $0xc8] sm:$0xff] %v129
          %v131 = vld [vmem:[%s77 + $0xd0] sm:$0xff]
          %132 = vst [vmem:[%s78 + $0xd0] sm:$0xff] %v131
          %v133 = vld [vmem:[%s77 + $0xd8] sm:$0xff]
          %134 = vst [vmem:[%s78 + $0xd8] sm:$0xff] %v133
          %v135 = vld [vmem:[%s77 + $0xe0] sm:$0xff]
          %136 = vst [vmem:[%s78 + $0xe0] sm:$0xff] %v135
          %v137 = vld [vmem:[%s77 + $0xe8] sm:$0xff]
          %138 = vst [vmem:[%s78 + $0xe8] sm:$0xff] %v137
          %v139 = vld [vmem:[%s77 + $0xf0] sm:$0xff]
          %140 = vst [vmem:[%s78 + $0xf0] sm:$0xff] %v139
          %v141 = vld [vmem:[%s77 + $0xf8] sm:$0xff]
          %142 = vst [vmem:[%s78 + $0xf8] sm:$0xff] %v141
          %v143 = vld [vmem:[%s77 + $0x100] sm:$0xff]
          %144 = vst [vmem:[%s78 + $0x100] sm:$0xff] %v143
          %v145 = vld [vmem:[%s77 + $0x108] sm:$0xff]
          %146 = vst [vmem:[%s78 + $0x108] sm:$0xff] %v145
          %v147 = vld [vmem:[%s77 + $0x110] sm:$0xff]
          %148 = vst [vmem:[%s78 + $0x110] sm:$0xff] %v147
          %v149 = vld [vmem:[%s77 + $0x118] sm:$0xff]
          %150 = vst [vmem:[%s78 + $0x118] sm:$0xff] %v149
          %v151 = vld [vmem:[%s77 + $0x120] sm:$0xff]
          %152 = vst [vmem:[%s78 + $0x120] sm:$0xff] %v151
          %v153 = vld [vmem:[%s77 + $0x128] sm:$0xff]
          %154 = vst [vmem:[%s78 + $0x128] sm:$0xff] %v153
          %v155 = vld [vmem:[%s77 + $0x130] sm:$0xff]
          %156 = vst [vmem:[%s78 + $0x130] sm:$0xff] %v155
          %v157 = vld [vmem:[%s77 + $0x138] sm:$0xff]
          %158 = vst [vmem:[%s78 + $0x138] sm:$0xff] %v157
          %v159 = vld [vmem:[%s77 + $0x140] sm:$0xff]
          %160 = vst [vmem:[%s78 + $0x140] sm:$0xff] %v159
          %v161 = vld [vmem:[%s77 + $0x148] sm:$0xff]
          %162 = vst [vmem:[%s78 + $0x148] sm:$0xff] %v161
          %v163 = vld [vmem:[%s77 + $0x150] sm:$0xff]
          %164 = vst [vmem:[%s78 + $0x150] sm:$0xff] %v163
          %v165 = vld [vmem:[%s77 + $0x158] sm:$0xff]
          %166 = vst [vmem:[%s78 + $0x158] sm:$0xff] %v165
          %v167 = vld [vmem:[%s77 + $0x160] sm:$0xff]
          %168 = vst [vmem:[%s78 + $0x160] sm:$0xff] %v167
          %v169 = vld [vmem:[%s77 + $0x168] sm:$0xff]
          %170 = vst [vmem:[%s78 + $0x168] sm:$0xff] %v169
          %v171 = vld [vmem:[%s77 + $0x170] sm:$0xff]
          %172 = vst [vmem:[%s78 + $0x170] sm:$0xff] %v171
          %v173 = vld [vmem:[%s77 + $0x178] sm:$0xff]
          %174 = vst [vmem:[%s78 + $0x178] sm:$0xff] %v173
        $region65: #{meru_forward.1} parent=59 // loop_footer
          %s76 = sadd.s32 1, %s72
        $region66: #{meru_forward.1} parent=59 // loop_footer_branch
          %71 = sbr.rel target = $region62
        $region67: #{meru_forward.1} parent=59 // loop_exit
          _
      $region60: #{meru_forward.1} parent=44 // pred_fallthru
        _
      %p175 = pneg %p67
      // Predicated region
      $region68: #{meru_forward.1} parent=44 // pred_check
        _
      $region69: #{meru_forward.1} parent=44 // pred_check_branch
        %177 = sbr.rel (%p67) target = $region71
      $region70: #{meru_forward.1} parent=44 // pred_region
        %s178 = sand.u32 384, 7
      $region71: #{meru_forward.1} parent=44 // pred_fallthru
        _
    $region45: #{meru_forward.1} parent=1 // pred_fallthru
      _
    // Predicated region
    $region46: #{meru_forward.1} parent=1 // pred_check
      %p52 = pneg %p48
    $region47: #{meru_forward.1} parent=1 // pred_check_branch
      %54 = sbr.rel (%p52) target = $region49
    $region48: #{meru_forward.1} parent=1 // pred_region
      %s55 = sshllo.u32 0, 384
      loop: start=0, step=1, limit=1
      $region50: #{meru_forward.1} parent=48 // loop_pre_header
        _
      $region51: #{meru_forward.1} parent=48 // loop_header
        %s57 = sphi 0, %s61
        %p58 = scmp.ge.s32.totalorder %s57, 1
        %s62 = sphi %s4, %s4
        %s63 = sphi [#allocation2], [#allocation2]
      $region52: #{meru_forward.1} parent=48 // loop_header_branch
        %60 = sbr.rel (%p58) target = $region56
      $region53: #{meru_forward.1} parent=48 // loop_body
        %v64 = vld [vmem:[%s62] sm:%s55]
        %65 = vst [vmem:[%s63] sm:%s55] %v64
      $region54: #{meru_forward.1} parent=48 // loop_footer
        %s61 = sadd.s32 1, %s57
      $region55: #{meru_forward.1} parent=48 // loop_footer_branch
        %56 = sbr.rel target = $region51
      $region56: #{meru_forward.1} parent=48 // loop_exit
        _
    $region49: #{meru_forward.1} parent=1 // pred_fallthru
      _
    // Predicated region
    $region72: #{meru_forward.1} parent=1 // pred_check
      _
    $region73: #{meru_forward.1} parent=1 // pred_check_branch
      %181 = sbr.rel (0) target = $region75
    $region74: #{meru_forward.1} parent=1 // pred_region
      %182 = vsyncadd [#allocation3], 6144
    $region75: #{meru_forward.1} parent=1 // pred_fallthru
      _
    %s183 = sld [smem:[#allocation4]]
    %s184 = sld [smem:[#allocation4 + $0x1]]
    %s185 = sld [smem:[#allocation4 + $0x2]]
    %s186 = sld [smem:[#allocation4 + $0x3]]
    %s187 = sld [smem:[#allocation4 + $0x4]]
    %s188 = sld [smem:[#allocation4 + $0x5]]
    %v189 = vlaneseq
    %v190 = vand.u32 %v189, 127
    %v191 = vld [vmem:[%s1] sm:$0xff]
    %192 = vset.pattern.permute.xlu0 0
    %193 = vperm.xlu0 %192, %v191
    %v194 = vpop.permute.xlu0 %193
    %vm195 = vcmp.eq.s32.totalorder %v190, %v194
    %v196 = vsel %vm195, 1, 0
    %v197 = vcvt.s32.f32 %v196
    %v198 = vpack.c.bf16 %v197, %v197
    %v199 = vld [vmem:[%s2] sm:$0xff]
    %200 = vset.pattern.permute.xlu0 0
    %201 = vperm.xlu0 %200, %v199
    %v202 = vpop.permute.xlu0 %201
    %vm203 = vcmp.eq.s32.totalorder %v190, %v202
    %v204 = vsel %vm203, 1, 0
    %v205 = vcvt.s32.f32 %v204
    %v206 = vpack.c.bf16 %v205, %v205
    %v207 = vld [vmem:[%s6] sm:$0xf]
    %v208 = vld [vmem:[%s6 + $0x4] sm:$0xf]
    %v209 = vld [vmem:[%s6 + $0x8] sm:$0xf]
    %v210 = vld [vmem:[%s6 + $0xc] sm:$0xf]
    %v211 = vld [vmem:[%s6 + $0x10] sm:$0xf]
    %v212 = vld [vmem:[%s6 + $0x14] sm:$0xf]
    %v213 = vld [vmem:[%s6 + $0x18] sm:$0xf]
    %v214 = vld [vmem:[%s6 + $0x1c] sm:$0xf]
    %v215 = vld [vmem:[%s7] sm:$0xf]
    %v216 = vld [vmem:[%s7 + $0x4] sm:$0xf]
    %v219 = vunpack.c.l.b16 %v215
    %v220 = vunpack.c.l.b16 %v216
    %v221 = vpack.c.b16 %v220, %v219
    %vm223 = vcmask 130048
    %v225 = vsel %vm223, %v206, 0
    %227 = vmatprep.subr.bf16.mxu0 0
    %228 = vmatpush1.bf16.msra.mxu0 %v221
    %229 = vmatprep.subr.bf16.mxu0 0
    %230 = vmatpush1.bf16.msra.mxu0 0
    %231 = vmatprep.subr.bf16.mxu0 0
    %232 = vmatpush1.bf16.msra.mxu0 0
    %233 = vmatprep.subr.bf16.mxu0 0
    %234 = vmatpush1.bf16.msra.mxu0 0
    %235 = vmatprep.subr.bf16.mxu0 0
    %236 = vmatpush1.bf16.msra.mxu0 0
    %237 = vmatprep.subr.bf16.mxu0 0
    %238 = vmatpush1.bf16.msra.mxu0 0
    %239 = vmatprep.subr.bf16.mxu0 0
    %240 = vmatpush1.bf16.msra.mxu0 0
    %241 = vmatprep.subr.bf16.mxu0 0
    %242 = vmatpush1.bf16.msra.mxu0 0
    %243 = vmatprep.subr.bf16.mxu0 0
    %244 = vmatpush1.bf16.msra.mxu0 0
    %245 = vmatprep.subr.bf16.mxu0 0
    %246 = vmatpush1.bf16.msra.mxu0 0
    %247 = vmatprep.subr.bf16.mxu0 0
    %248 = vmatpush1.bf16.msra.mxu0 0
    %249 = vmatprep.subr.bf16.mxu0 0
    %250 = vmatpush1.bf16.msra.mxu0 0
    %251 = vmatprep.subr.bf16.mxu0 0
    %252 = vmatpush1.bf16.msra.mxu0 0
    %253 = vmatprep.subr.bf16.mxu0 0
    %254 = vmatpush1.bf16.msra.mxu0 0
    %255 = vmatprep.subr.bf16.mxu0 0
    %256 = vmatpush1.bf16.msra.mxu0 0
    %257 = vmatprep.subr.bf16.mxu0 0
    %258 = vmatpush1.bf16.msra.mxu0 0
    %259 = vmatprep.mubr.bf16.mxu0 0
    %260 = vmatmul.mubr.bf16.gmra.mrb[0].mxu0 %v225
    %v261 = vpop.f32.mrb[0].mxu0
    %v262 = vadd.f32 0.0, %v261
    %v263 = vpop.f32.mrb[0].mxu0
    %v264 = vpop.f32.mrb[0].mxu0
    %v265 = vpop.f32.mrb[0].mxu0
    %266 = vdwg.mxu0
    %v275 = vunpack.c.l.b16 %v207
    %v276 = vunpack.c.l.b16 %v208
    %v277 = vunpack.c.l.b16 %v209
    %v278 = vunpack.c.l.b16 %v210
    %v279 = vunpack.c.l.b16 %v211
    %v280 = vunpack.c.l.b16 %v212
    %v281 = vunpack.c.l.b16 %v213
    %v282 = vunpack.c.l.b16 %v214
    %v283 = vpack.c.b16 %v276, %v275
    %v284 = vpack.c.b16 %v278, %v277
    %v285 = vpack.c.b16 %v280, %v279
    %v286 = vpack.c.b16 %v282, %v281
    %vm291 = vcmask 523264
    %v293 = vsel %vm291, %v198, 0
    %295 = vmatprep.subr.bf16.mxu0 0
    %296 = vmatpush1.bf16.msra.mxu0 %v283
    %297 = vmatprep.subr.bf16.mxu0 0
    %298 = vmatpush1.bf16.msra.mxu0 %v284
    %299 = vmatprep.subr.bf16.mxu0 0
    %300 = vmatpush1.bf16.msra.mxu0 %v285
    %301 = vmatprep.subr.bf16.mxu0 0
    %302 = vmatpush1.bf16.msra.mxu0 %v286
    %303 = vmatprep.subr.bf16.mxu0 0
    %304 = vmatpush1.bf16.msra.mxu0 0
    %305 = vmatprep.subr.bf16.mxu0 0
    %306 = vmatpush1.bf16.msra.mxu0 0
    %307 = vmatprep.subr.bf16.mxu0 0
    %308 = vmatpush1.bf16.msra.mxu0 0
    %309 = vmatprep.subr.bf16.mxu0 0
    %310 = vmatpush1.bf16.msra.mxu0 0
    %311 = vmatprep.subr.bf16.mxu0 0
    %312 = vmatpush1.bf16.msra.mxu0 0
    %313 = vmatprep.subr.bf16.mxu0 0
    %314 = vmatpush1.bf16.msra.mxu0 0
    %315 = vmatprep.subr.bf16.mxu0 0
    %316 = vmatpush1.bf16.msra.mxu0 0
    %317 = vmatprep.subr.bf16.mxu0 0
    %318 = vmatpush1.bf16.msra.mxu0 0
    %319 = vmatprep.subr.bf16.mxu0 0
    %320 = vmatpush1.bf16.msra.mxu0 0
    %321 = vmatprep.subr.bf16.mxu0 0
    %322 = vmatpush1.bf16.msra.mxu0 0
    %323 = vmatprep.subr.bf16.mxu0 0
    %324 = vmatpush1.bf16.msra.mxu0 0
    %325 = vmatprep.subr.bf16.mxu0 0
    %326 = vmatpush1.bf16.msra.mxu0 0
    %327 = vmatprep.mubr.bf16.mxu0 0
    %328 = vmatmul.mubr.bf16.gmra.mrb[0].mxu0 %v293
    %v329 = vpop.f32.mrb[0].mxu0
    %v330 = vadd.f32 %v262, %v329
    %v331 = vpop.f32.mrb[0].mxu0
    %v332 = vpop.f32.mrb[0].mxu0
    %v333 = vpop.f32.mrb[0].mxu0
    %334 = vdwg.mxu0
    %v335 = vpack.c.bf16 %v330, %v330
    %v336 = vld [vmem:[%s8] sm:$0xf]
    %v337 = vld [vmem:[%s8 + $0x4] sm:$0xf]
    %v338 = vld [vmem:[%s8 + $0x8] sm:$0xf]
    %v339 = vld [vmem:[%s8 + $0xc] sm:$0xf]
    %v340 = vld [vmem:[%s8 + $0x10] sm:$0xf]
    %v341 = vld [vmem:[%s8 + $0x14] sm:$0xf]
    %v342 = vld [vmem:[%s8 + $0x18] sm:$0xf]
    %v343 = vld [vmem:[%s8 + $0x1c] sm:$0xf]
    %v344 = vld [vmem:[%s8 + $0x20] sm:$0xf]
    %v345 = vld [vmem:[%s8 + $0x24] sm:$0xf]
    %v346 = vld [vmem:[%s8 + $0x28] sm:$0xf]
    %v347 = vld [vmem:[%s8 + $0x2c] sm:$0xf]
    %v348 = vld [vmem:[%s8 + $0x30] sm:$0xf]
    %v349 = vld [vmem:[%s8 + $0x34] sm:$0xf]
    %v350 = vld [vmem:[%s8 + $0x38] sm:$0xf]
    %v351 = vld [vmem:[%s8 + $0x3c] sm:$0xf]
    %v368 = vunpack.c.l.b16 %v336
    %v369 = vunpack.c.l.b16 %v337
    %v370 = vunpack.c.l.b16 %v338
    %v371 = vunpack.c.l.b16 %v339
    %v372 = vunpack.c.l.b16 %v340
    %v373 = vunpack.c.l.b16 %v341
    %v374 = vunpack.c.l.b16 %v342
    %v375 = vunpack.c.l.b16 %v343
    %v376 = vunpack.c.l.b16 %v344
    %v377 = vunpack.c.l.b16 %v345
    %v378 = vunpack.c.l.b16 %v346
    %v379 = vunpack.c.l.b16 %v347
    %v380 = vunpack.c.l.b16 %v348
    %v381 = vunpack.c.l.b16 %v349
    %v382 = vunpack.c.l.b16 %v350
    %v383 = vunpack.c.l.b16 %v351
    %v384 = vpack.c.b16 %v369, %v368
    %v385 = vpack.c.b16 %v371, %v370
    %v386 = vpack.c.b16 %v373, %v372
    %v387 = vpack.c.b16 %v375, %v374
    %v388 = vpack.c.b16 %v377, %v376
    %v389 = vpack.c.b16 %v379, %v378
    %v390 = vpack.c.b16 %v381, %v380
    %v391 = vpack.c.b16 %v383, %v382
    %400 = vmatprep.subr.bf16.mxu0 0
    %401 = vmatpush1.bf16.msra.mxu0 %v384
    %402 = vmatprep.subr.bf16.mxu0 0
    %403 = vmatpush1.bf16.msra.mxu0 %v385
    %404 = vmatprep.subr.bf16.mxu0 0
    %405 = vmatpush1.bf16.msra.mxu0 %v386
    %406 = vmatprep.subr.bf16.mxu0 0
    %407 = vmatpush1.bf16.msra.mxu0 %v387
    %408 = vmatprep.subr.bf16.mxu0 0
    %409 = vmatpush1.bf16.msra.mxu0 %v388
    %410 = vmatprep.subr.bf16.mxu0 0
    %411 = vmatpush1.bf16.msra.mxu0 %v389
    %412 = vmatprep.subr.bf16.mxu0 0
    %413 = vmatpush1.bf16.msra.mxu0 %v390
    %414 = vmatprep.subr.bf16.mxu0 0
    %415 = vmatpush1.bf16.msra.mxu0 %v391
    %416 = vmatprep.subr.bf16.mxu0 0
    %417 = vmatpush1.bf16.msra.mxu0 0
    %418 = vmatprep.subr.bf16.mxu0 0
    %419 = vmatpush1.bf16.msra.mxu0 0
    %420 = vmatprep.subr.bf16.mxu0 0
    %421 = vmatpush1.bf16.msra.mxu0 0
    %422 = vmatprep.subr.bf16.mxu0 0
    %423 = vmatpush1.bf16.msra.mxu0 0
    %424 = vmatprep.subr.bf16.mxu0 0
    %425 = vmatpush1.bf16.msra.mxu0 0
    %426 = vmatprep.subr.bf16.mxu0 0
    %427 = vmatpush1.bf16.msra.mxu0 0
    %428 = vmatprep.subr.bf16.mxu0 0
    %429 = vmatpush1.bf16.msra.mxu0 0
    %430 = vmatprep.subr.bf16.mxu0 0
    %431 = vmatpush1.bf16.msra.mxu0 0
    %432 = vmatprep.mubr.bf16.mxu0 0
    %433 = vmatmul.mubr.bf16.gmra.mrb[0].mxu0 %v335
    %v434 = vpop.f32.mrb[0].mxu0
    %v435 = vadd.f32 0.0, %v434
    %v436 = vpop.f32.mrb[0].mxu0
    %v437 = vpop.f32.mrb[0].mxu0
    %v438 = vpop.f32.mrb[0].mxu0
    %439 = vdwg.mxu0
    %s440 = smul.u32 4, 96
    %s441 = smul.u32 %s440, 1
    %s442 = sshll.u32 %s441, 4
    %443 = dma.done [#allocation3], %s442
    %v444 = vld [vmem:[%s3] sm:$0xff]
    %v445 = vld [vmem:[%s3 + $0x8] sm:$0xff]
    %v446 = vld [vmem:[%s3 + $0x10] sm:$0xff]
    %v447 = vld [vmem:[%s3 + $0x18] sm:$0xff]
    %v448 = vld [vmem:[%s3 + $0x20] sm:$0xff]
    %v449 = vld [vmem:[%s3 + $0x28] sm:$0xff]
    %v450 = vpack.c.bf16 %v444, %v444
    %v451 = vpack.c.bf16 %v445, %v445
    %v452 = vpack.c.bf16 %v446, %v446
    %v453 = vpack.c.bf16 %v447, %v447
    %v454 = vpack.c.bf16 %v448, %v448
    %v455 = vpack.c.bf16 %v449, %v449
    %v456 = vld [vmem:[#allocation2] sm:$0xff]
    %v457 = vld [vmem:[#allocation2 + $0x8] sm:$0xff]
    %v458 = vld [vmem:[#allocation2 + $0x10] sm:$0xff]
    %v459 = vld [vmem:[#allocation2 + $0x18] sm:$0xff]
    %v460 = vld [vmem:[#allocation2 + $0x20] sm:$0xff]
    %v461 = vld [vmem:[#allocation2 + $0x28] sm:$0xff]
    %v462 = vld [vmem:[#allocation2 + $0x30] sm:$0xff]
    %v463 = vld [vmem:[#allocation2 + $0x38] sm:$0xff]
    %v464 = vld [vmem:[#allocation2 + $0x40] sm:$0xff]
    %v465 = vld [vmem:[#allocation2 + $0x48] sm:$0xff]
    %v466 = vld [vmem:[#allocation2 + $0x50] sm:$0xff]
    %v467 = vld [vmem:[#allocation2 + $0x58] sm:$0xff]
    %v468 = vld [vmem:[#allocation2 + $0x60] sm:$0xff]
    %v469 = vld [vmem:[#allocation2 + $0x68] sm:$0xff]
    %v470 = vld [vmem:[#allocation2 + $0x70] sm:$0xff]
    %v471 = vld [vmem:[#allocation2 + $0x78] sm:$0xff]
    %v472 = vld [vmem:[#allocation2 + $0x80] sm:$0xff]
    %v473 = vld [vmem:[#allocation2 + $0x88] sm:$0xff]
    %v474 = vld [vmem:[#allocation2 + $0x90] sm:$0xff]
    %v475 = vld [vmem:[#allocation2 + $0x98] sm:$0xff]
    %v476 = vld [vmem:[#allocation2 + $0xa0] sm:$0xff]
    %v477 = vld [vmem:[#allocation2 + $0xa8] sm:$0xff]
    %v478 = vld [vmem:[#allocation2 + $0xb0] sm:$0xff]
    %v479 = vld [vmem:[#allocation2 + $0xb8] sm:$0xff]
    %v480 = vld [vmem:[#allocation2 + $0xc0] sm:$0xff]
    %v481 = vld [vmem:[#allocation2 + $0xc8] sm:$0xff]
    %v482 = vld [vmem:[#allocation2 + $0xd0] sm:$0xff]
    %v483 = vld [vmem:[#allocation2 + $0xd8] sm:$0xff]
    %v484 = vld [vmem:[#allocation2 + $0xe0] sm:$0xff]
    %v485 = vld [vmem:[#allocation2 + $0xe8] sm:$0xff]
    %v486 = vld [vmem:[#allocation2 + $0xf0] sm:$0xff]
    %v487 = vld [vmem:[#allocation2 + $0xf8] sm:$0xff]
    %v488 = vld [vmem:[#allocation2 + $0x100] sm:$0xff]
    %v489 = vld [vmem:[#allocation2 + $0x108] sm:$0xff]
    %v490 = vld [vmem:[#allocation2 + $0x110] sm:$0xff]
    %v491 = vld [vmem:[#allocation2 + $0x118] sm:$0xff]
    %v492 = vld [vmem:[#allocation2 + $0x120] sm:$0xff]
    %v493 = vld [vmem:[#allocation2 + $0x128] sm:$0xff]
    %v494 = vld [vmem:[#allocation2 + $0x130] sm:$0xff]
    %v495 = vld [vmem:[#allocation2 + $0x138] sm:$0xff]
    %v496 = vld [vmem:[#allocation2 + $0x140] sm:$0xff]
    %v497 = vld [vmem:[#allocation2 + $0x148] sm:$0xff]
    %v498 = vld [vmem:[#allocation2 + $0x150] sm:$0xff]
    %v499 = vld [vmem:[#allocation2 + $0x158] sm:$0xff]
    %v500 = vld [vmem:[#allocation2 + $0x160] sm:$0xff]
    %v501 = vld [vmem:[#allocation2 + $0x168] sm:$0xff]
    %v502 = vld [vmem:[#allocation2 + $0x170] sm:$0xff]
    %v503 = vld [vmem:[#allocation2 + $0x178] sm:$0xff]
    %v504 = vld [vmem:[%s5] sm:$0x1]
    %v506 = vlaneseq
    %v507 = vshrl.u32 %v506, 7
    %v508 = vsub.s32 0, %v507
    %v509 = vrot.slane %v504, %v508
    %511 = vmatprep.subr.bf16.mxu0 0
    %512 = vmatpush1.bf16.msra.mxu0 %v456
    %513 = vmatprep.subr.bf16.mxu0 0
    %514 = vmatpush1.bf16.msra.mxu0 %v457
    %515 = vmatprep.subr.bf16.mxu0 0
    %516 = vmatpush1.bf16.msra.mxu0 %v458
    %517 = vmatprep.subr.bf16.mxu0 0
    %518 = vmatpush1.bf16.msra.mxu0 %v459
    %519 = vmatprep.subr.bf16.mxu0 0
    %520 = vmatpush1.bf16.msra.mxu0 %v460
    %521 = vmatprep.subr.bf16.mxu0 0
    %522 = vmatpush1.bf16.msra.mxu0 %v461
    %523 = vmatprep.subr.bf16.mxu0 0
    %524 = vmatpush1.bf16.msra.mxu0 %v462
    %525 = vmatprep.subr.bf16.mxu0 0
    %526 = vmatpush1.bf16.msra.mxu0 %v463
    %527 = vmatprep.subr.bf16.mxu0 0
    %528 = vmatpush1.bf16.msra.mxu0 %v464
    %529 = vmatprep.subr.bf16.mxu0 0
    %530 = vmatpush1.bf16.msra.mxu0 %v465
    %531 = vmatprep.subr.bf16.mxu0 0
    %532 = vmatpush1.bf16.msra.mxu0 %v466
    %533 = vmatprep.subr.bf16.mxu0 0
    %534 = vmatpush1.bf16.msra.mxu0 %v467
    %535 = vmatprep.subr.bf16.mxu0 0
    %536 = vmatpush1.bf16.msra.mxu0 %v468
    %537 = vmatprep.subr.bf16.mxu0 0
    %538 = vmatpush1.bf16.msra.mxu0 %v469
    %539 = vmatprep.subr.bf16.mxu0 0
    %540 = vmatpush1.bf16.msra.mxu0 %v470
    %541 = vmatprep.subr.bf16.mxu0 0
    %542 = vmatpush1.bf16.msra.mxu0 %v471
    %543 = vmatprep.mubr.bf16.mxu0 %v451
    %544 = vmatmul.mubr.bf16.gmra.mrb[0].mxu0 %v450
    %v545 = vpop.f32.mrb[0].mxu0
    %v546 = vadd.f32 %v509, %v545
    %v547 = vpop.f32.mrb[0].mxu0
    %v548 = vpop.f32.mrb[0].mxu0
    %v549 = vpop.f32.mrb[0].mxu0
    %550 = vdwg.mxu0
    %551 = vmatprep.subr.bf16.mxu0 0
    %552 = vmatpush1.bf16.msra.mxu0 %v472
    %553 = vmatprep.subr.bf16.mxu0 0
    %554 = vmatpush1.bf16.msra.mxu0 %v473
    %555 = vmatprep.subr.bf16.mxu0 0
    %556 = vmatpush1.bf16.msra.mxu0 %v474
    %557 = vmatprep.subr.bf16.mxu0 0
    %558 = vmatpush1.bf16.msra.mxu0 %v475
    %559 = vmatprep.subr.bf16.mxu0 0
    %560 = vmatpush1.bf16.msra.mxu0 %v476
    %561 = vmatprep.subr.bf16.mxu0 0
    %562 = vmatpush1.bf16.msra.mxu0 %v477
    %563 = vmatprep.subr.bf16.mxu0 0
    %564 = vmatpush1.bf16.msra.mxu0 %v478
    %565 = vmatprep.subr.bf16.mxu0 0
    %566 = vmatpush1.bf16.msra.mxu0 %v479
    %567 = vmatprep.subr.bf16.mxu0 0
    %568 = vmatpush1.bf16.msra.mxu0 %v480
    %569 = vmatprep.subr.bf16.mxu0 0
    %570 = vmatpush1.bf16.msra.mxu0 %v481
    %571 = vmatprep.subr.bf16.mxu0 0
    %572 = vmatpush1.bf16.msra.mxu0 %v482
    %573 = vmatprep.subr.bf16.mxu0 0
    %574 = vmatpush1.bf16.msra.mxu0 %v483
    %575 = vmatprep.subr.bf16.mxu0 0
    %576 = vmatpush1.bf16.msra.mxu0 %v484
    %577 = vmatprep.subr.bf16.mxu0 0
    %578 = vmatpush1.bf16.msra.mxu0 %v485
    %579 = vmatprep.subr.bf16.mxu0 0
    %580 = vmatpush1.bf16.msra.mxu0 %v486
    %581 = vmatprep.subr.bf16.mxu0 0
    %582 = vmatpush1.bf16.msra.mxu0 %v487
    %583 = vmatprep.mubr.bf16.mxu0 %v453
    %584 = vmatmul.mubr.bf16.gmra.mrb[0].mxu0 %v452
    %v585 = vpop.f32.mrb[0].mxu0
    %v586 = vadd.f32 %v546, %v585
    %v587 = vpop.f32.mrb[0].mxu0
    %v588 = vpop.f32.mrb[0].mxu0
    %v589 = vpop.f32.mrb[0].mxu0
    %590 = vdwg.mxu0
    %591 = vmatprep.subr.bf16.mxu0 0
    %592 = vmatpush1.bf16.msra.mxu0 %v488
    %593 = vmatprep.subr.bf16.mxu0 0
    %594 = vmatpush1.bf16.msra.mxu0 %v489
    %595 = vmatprep.subr.bf16.mxu0 0
    %596 = vmatpush1.bf16.msra.mxu0 %v490
    %597 = vmatprep.subr.bf16.mxu0 0
    %598 = vmatpush1.bf16.msra.mxu0 %v491
    %599 = vmatprep.subr.bf16.mxu0 0
    %600 = vmatpush1.bf16.msra.mxu0 %v492
    %601 = vmatprep.subr.bf16.mxu0 0
    %602 = vmatpush1.bf16.msra.mxu0 %v493
    %603 = vmatprep.subr.bf16.mxu0 0
    %604 = vmatpush1.bf16.msra.mxu0 %v494
    %605 = vmatprep.subr.bf16.mxu0 0
    %606 = vmatpush1.bf16.msra.mxu0 %v495
    %607 = vmatprep.subr.bf16.mxu0 0
    %608 = vmatpush1.bf16.msra.mxu0 %v496
    %609 = vmatprep.subr.bf16.mxu0 0
    %610 = vmatpush1.bf16.msra.mxu0 %v497
    %611 = vmatprep.subr.bf16.mxu0 0
    %612 = vmatpush1.bf16.msra.mxu0 %v498
    %613 = vmatprep.subr.bf16.mxu0 0
    %614 = vmatpush1.bf16.msra.mxu0 %v499
    %615 = vmatprep.subr.bf16.mxu0 0
    %616 = vmatpush1.bf16.msra.mxu0 %v500
    %617 = vmatprep.subr.bf16.mxu0 0
    %618 = vmatpush1.bf16.msra.mxu0 %v501
    %619 = vmatprep.subr.bf16.mxu0 0
    %620 = vmatpush1.bf16.msra.mxu0 %v502
    %621 = vmatprep.subr.bf16.mxu0 0
    %622 = vmatpush1.bf16.msra.mxu0 %v503
    %623 = vmatprep.mubr.bf16.mxu0 %v455
    %624 = vmatmul.mubr.bf16.gmra.mrb[0].mxu0 %v454
    %v625 = vpop.f32.mrb[0].mxu0
    %v626 = vadd.f32 %v586, %v625
    %v627 = vpop.f32.mrb[0].mxu0
    %v628 = vpop.f32.mrb[0].mxu0
    %v629 = vpop.f32.mrb[0].mxu0
    %630 = vdwg.mxu0
    %v631 = vpack.c.bf16 %v435, %v626
    %v632 = vld [vmem:[%s9] sm:$0xf]
    %v633 = vld [vmem:[%s9 + $0x4] sm:$0xf]
    %v634 = vld [vmem:[%s9 + $0x8] sm:$0xf]
    %v635 = vld [vmem:[%s9 + $0xc] sm:$0xf]
    %v636 = vld [vmem:[%s9 + $0x10] sm:$0xf]
    %v637 = vld [vmem:[%s9 + $0x14] sm:$0xf]
    %v638 = vld [vmem:[%s9 + $0x18] sm:$0xf]
    %v639 = vld [vmem:[%s9 + $0x1c] sm:$0xf]
    %v640 = vld [vmem:[%s9 + $0x20] sm:$0xf]
    %v641 = vld [vmem:[%s9 + $0x24] sm:$0xf]
    %v642 = vld [vmem:[%s9 + $0x28] sm:$0xf]
    %v643 = vld [vmem:[%s9 + $0x2c] sm:$0xf]
    %v644 = vld [vmem:[%s9 + $0x30] sm:$0xf]
    %v645 = vld [vmem:[%s9 + $0x34] sm:$0xf]
    %v646 = vld [vmem:[%s9 + $0x38] sm:$0xf]
    %v647 = vld [vmem:[%s9 + $0x3c] sm:$0xf]
    %v664 = vunpack.c.l.b16 %v632
    %v665 = vunpack.c.l.b16 %v633
    %v666 = vunpack.c.l.b16 %v634
    %v667 = vunpack.c.l.b16 %v635
    %v668 = vunpack.c.l.b16 %v636
    %v669 = vunpack.c.l.b16 %v637
    %v670 = vunpack.c.l.b16 %v638
    %v671 = vunpack.c.l.b16 %v639
    %v672 = vunpack.c.l.b16 %v640
    %v673 = vunpack.c.l.b16 %v641
    %v674 = vunpack.c.l.b16 %v642
    %v675 = vunpack.c.l.b16 %v643
    %v676 = vunpack.c.l.b16 %v644
    %v677 = vunpack.c.l.b16 %v645
    %v678 = vunpack.c.l.b16 %v646
    %v679 = vunpack.c.l.b16 %v647
    %v680 = vpack.c.b16 %v665, %v664
    %v681 = vpack.c.b16 %v667, %v666
    %v682 = vpack.c.b16 %v669, %v668
    %v683 = vpack.c.b16 %v671, %v670
    %v684 = vpack.c.b16 %v673, %v672
    %v685 = vpack.c.b16 %v675, %v674
    %v686 = vpack.c.b16 %v677, %v676
    %v687 = vpack.c.b16 %v679, %v678
    %696 = vmatprep.subr.bf16.mxu0 0
    %697 = vmatpush1.bf16.msra.mxu0 %v680
    %698 = vmatprep.subr.bf16.mxu0 0
    %699 = vmatpush1.bf16.msra.mxu0 %v681
    %700 = vmatprep.subr.bf16.mxu0 0
    %701 = vmatpush1.bf16.msra.mxu0 %v682
    %702 = vmatprep.subr.bf16.mxu0 0
    %703 = vmatpush1.bf16.msra.mxu0 %v683
    %704 = vmatprep.subr.bf16.mxu0 0
    %705 = vmatpush1.bf16.msra.mxu0 %v684
    %706 = vmatprep.subr.bf16.mxu0 0
    %707 = vmatpush1.bf16.msra.mxu0 %v685
    %708 = vmatprep.subr.bf16.mxu0 0
    %709 = vmatpush1.bf16.msra.mxu0 %v686
    %710 = vmatprep.subr.bf16.mxu0 0
    %711 = vmatpush1.bf16.msra.mxu0 %v687
    %712 = vmatprep.subr.bf16.mxu0 0
    %713 = vmatpush1.bf16.msra.mxu0 0
    %714 = vmatprep.subr.bf16.mxu0 0
    %715 = vmatpush1.bf16.msra.mxu0 0
    %716 = vmatprep.subr.bf16.mxu0 0
    %717 = vmatpush1.bf16.msra.mxu0 0
    %718 = vmatprep.subr.bf16.mxu0 0
    %719 = vmatpush1.bf16.msra.mxu0 0
    %720 = vmatprep.subr.bf16.mxu0 0
    %721 = vmatpush1.bf16.msra.mxu0 0
    %722 = vmatprep.subr.bf16.mxu0 0
    %723 = vmatpush1.bf16.msra.mxu0 0
    %724 = vmatprep.subr.bf16.mxu0 0
    %725 = vmatpush1.bf16.msra.mxu0 0
    %726 = vmatprep.subr.bf16.mxu0 0
    %727 = vmatpush1.bf16.msra.mxu0 0
    %728 = vmatprep.mubr.bf16.mxu0 0
    %729 = vmatmul.mubr.bf16.gmra.mrb[0].mxu0 %v631
    %v730 = vpop.f32.mrb[0].mxu0
    %v731 = vadd.f32 0.0, %v730
    %v732 = vpop.f32.mrb[0].mxu0
    %v733 = vpop.f32.mrb[0].mxu0
    %v734 = vadd.f32 0.0, %v733
    %v735 = vpop.f32.mrb[0].mxu0
    %736 = vdwg.mxu0
    %v737 = vstv %s183
    %v738 = vmul.f32 %v731, %v737
    %v739 = vstv %s184
    %v740 = vmul.f32 %v734, %v739
    %v741 = vmul.f32 %v738, %v738
    %v742 = vsel %vm291, %v741, 0.0
    %743 = vadd.xlane.f32.xlu0 %v742
    %v744 = vpop.xlane.xlu0 %743
    %v745 = vstv %s185
    %v746 = vmul.f32 %v745, %v744
    %v747 = vrsqrt.pop %v746
    %v748 = vmul.f32 %v746, %v747
    %vm749 = vcmp.eq.f32.partialorder %v746, inf
    %v750 = vsel %vm749, %v746, %v748
    %vm751 = vcmp.eq.f32.partialorder %v746, 0.0
    %v752 = vand.u32 %v746, 2147483648
    %v753 = vsel %vm751, %v752, %v750
    %v754 = vmax.f32 %v753, 1e-08
    %v755 = vmin.f32 %v754, 11.090355
    %v756 = vmul.f32 %v755, 1.442695
    %v757 = vpow.pop %v756
    %v758 = vsub.f32 0.0, %v755
    %v759 = vmul.f32 %v758, 1.442695
    %v760 = vpow.pop %v759
    %v761 = vsub.f32 %v757, %v760
    %v762 = vmul.f32 %v761, 0.5
    %v763 = vmul.f32 %v762, %v738
    %v764 = vrcp.pop %v754
    %v765 = vmul.f32 %v763, %v764
    %v766 = vmul.f32 %v740, %v740
    %768 = vrot.lane.b32.xlu0 %v766, 64
    %v769 = vpop.permute.xlu0 %768
    %v771 = vsel %vm291, %v769, 0.0
    %772 = vadd.xlane.f32.xlu0 %v771
    %v773 = vpop.xlane.xlu0 %772
    %v774 = vmul.f32 %v745, %v773
    %v775 = vrsqrt.pop %v774
    %v776 = vmul.f32 %v774, %v775
    %vm777 = vcmp.eq.f32.partialorder %v774, inf
    %v778 = vsel %vm777, %v774, %v776
    %vm779 = vcmp.eq.f32.partialorder %v774, 0.0
    %v780 = vand.u32 %v774, 2147483648
    %v781 = vsel %vm779, %v780, %v778
    %v782 = vmax.f32 %v781, 1e-08
    %v783 = vmin.f32 %v782, 11.090355
    %v784 = vmul.f32 %v783, 1.442695
    %v785 = vpow.pop %v784
    %v786 = vsub.f32 0.0, %v783
    %v787 = vmul.f32 %v786, 1.442695
    %v788 = vpow.pop %v787
    %v789 = vsub.f32 %v785, %v788
    %v790 = vmul.f32 %v789, 0.5
    %v791 = vmul.f32 %v790, %v740
    %v792 = vrcp.pop %v782
    %v793 = vmul.f32 %v791, %v792
    %v794 = vmul.f32 %v765, %v765
    %v795 = vsel %vm291, %v794, 0.0
    %796 = vadd.xlane.f32.xlu0 %v795
    %v797 = vpop.xlane.xlu0 %796
    %v798 = vmul.f32 %v793, %v793
    %800 = vrot.lane.b32.xlu0 %v798, 64
    %v801 = vpop.permute.xlu0 %800
    %v803 = vsel %vm291, %v801, 0.0
    %804 = vadd.xlane.f32.xlu0 %v803
    %v805 = vpop.xlane.xlu0 %804
    %v806 = vstv %s186
    %v807 = vadd.f32 %v806, %v797
    %v808 = vrsqrt.pop %v807
    %v809 = vmul.f32 %v807, %v808
    %vm810 = vcmp.eq.f32.partialorder %v807, inf
    %v811 = vsel %vm810, %v807, %v809
    %vm812 = vcmp.eq.f32.partialorder %v807, 0.0
    %v813 = vand.u32 %v807, 2147483648
    %v814 = vsel %vm812, %v813, %v811
    %v815 = vadd.f32 %v806, %v805
    %v816 = vrsqrt.pop %v815
    %v817 = vmul.f32 %v815, %v816
    %vm818 = vcmp.eq.f32.partialorder %v815, inf
    %v819 = vsel %vm818, %v815, %v817
    %vm820 = vcmp.eq.f32.partialorder %v815, 0.0
    %v821 = vand.u32 %v815, 2147483648
    %v822 = vsel %vm820, %v821, %v819
    %vm823 = vcmp.eq.s32.totalorder %v190, 0
    %v824 = vsel %vm823, %v814, 0.0
    %826 = vrot.lane.b32.xlu0 %v824, 64
    %v827 = vpop.permute.xlu0 %826
    %v829 = vsel %vm291, %v765, %v827
    %v830 = vsub.f32 0.0, %v822
    %v831 = vsel %vm823, %v830, 0.0
    %833 = vrot.lane.b32.xlu0 %v793, 64
    %v834 = vpop.permute.xlu0 %833
    %837 = vrot.lane.b32.xlu0 %v831, 64
    %v838 = vpop.permute.xlu0 %837
    %v840 = vsel %vm291, %v834, %v838
    %841 = vmatprep.subr.mxu0 0.0
    %842 = vmatpush1.xpose.msra.mxu0 %v840
    %843 = vmatprep.subr.mxu0 0.0
    %844 = vmatpush1.xpose.msra.mxu0 0.0
    %845 = vmatprep.subr.mxu0 0.0
    %846 = vmatpush1.xpose.msra.mxu0 0.0
    %847 = vmatprep.subr.mxu0 0.0
    %848 = vmatpush1.xpose.msra.mxu0 0.0
    %849 = vmatprep.subr.mxu0 0.0
    %850 = vmatpush1.xpose.msra.mxu0 0.0
    %851 = vmatprep.subr.mxu0 0.0
    %852 = vmatpush1.xpose.msra.mxu0 0.0
    %853 = vmatprep.subr.mxu0 0.0
    %854 = vmatpush1.xpose.msra.mxu0 0.0
    %855 = vmatprep.subr.mxu0 0.0
    %856 = vmatpush1.xpose.msra.mxu0 0.0
    %857 = vmatprep.subr.mxu0 0.0
    %858 = vmatpush1.xpose.msra.mxu0 0.0
    %859 = vmatprep.subr.mxu0 0.0
    %860 = vmatpush1.xpose.msra.mxu0 0.0
    %861 = vmatprep.subr.mxu0 0.0
    %862 = vmatpush1.xpose.msra.mxu0 0.0
    %863 = vmatprep.subr.mxu0 0.0
    %864 = vmatpush1.xpose.msra.mxu0 0.0
    %865 = vmatprep.subr.mxu0 0.0
    %866 = vmatpush1.xpose.msra.mxu0 0.0
    %867 = vmatprep.subr.mxu0 0.0
    %868 = vmatpush1.xpose.msra.mxu0 0.0
    %869 = vmatprep.subr.mxu0 0.0
    %870 = vmatpush1.xpose.msra.mxu0 0.0
    %871 = vmatprep.subr.mxu0 0.0
    %872 = vmatpush1.xpose.msra.mxu0 0.0
    %873 = vmatprep.subr.mxu0 0.0
    %874 = vmatpush1.xpose.msra.mxu0 0.0
    %875 = vmatprep.subr.mxu0 0.0
    %876 = vmatpush1.xpose.msra.mxu0 0.0
    %877 = vmatprep.subr.mxu0 0.0
    %878 = vmatpush1.xpose.msra.mxu0 0.0
    %879 = vmatprep.subr.mxu0 0.0
    %880 = vmatpush1.xpose.msra.mxu0 0.0
    %881 = vmatprep.subr.mxu0 0.0
    %882 = vmatpush1.xpose.msra.mxu0 0.0
    %883 = vmatprep.subr.mxu0 0.0
    %884 = vmatpush1.xpose.msra.mxu0 0.0
    %885 = vmatprep.subr.mxu0 0.0
    %886 = vmatpush1.xpose.msra.mxu0 0.0
    %887 = vmatprep.subr.mxu0 0.0
    %888 = vmatpush1.xpose.msra.mxu0 0.0
    %889 = vmatprep.subr.mxu0 0.0
    %890 = vmatpush1.xpose.msra.mxu0 0.0
    %891 = vmatprep.subr.mxu0 0.0
    %892 = vmatpush1.xpose.msra.mxu0 0.0
    %893 = vmatprep.subr.mxu0 0.0
    %894 = vmatpush1.xpose.msra.mxu0 0.0
    %895 = vmatprep.subr.mxu0 0.0
    %896 = vmatpush1.xpose.msra.mxu0 0.0
    %897 = vmatprep.subr.mxu0 0.0
    %898 = vmatpush1.xpose.msra.mxu0 0.0
    %899 = vmatprep.subr.mxu0 0.0
    %900 = vmatpush1.xpose.msra.mxu0 0.0
    %901 = vmatprep.subr.mxu0 0.0
    %902 = vmatpush1.xpose.msra.mxu0 0.0
    %903 = vmatprep.subr.mxu0 0.0
    %904 = vmatpush1.xpose.msra.mxu0 0.0
    %905 = vmatprep.mubr.f32.mxu0 0.0
    %906 = vmatmul.mubr.f32.gmra.mrb[0].mxu0 %v829
    %v907 = vpop.f32.mrb[0].mxu0
    %v908 = vadd.f32 0.0, %v907
    %v909 = vpop.f32.mrb[0].mxu0
    %910 = vdwg.mxu0
    %s911 = ssub.f32 0.0, %s185
    %v912 = vstv %s911
    %v913 = vmul.f32 %v912, %v908
    %v914 = vsub.f32 %v913, 1.0
    %v915 = vmax.f32 %v914, 1e-08
    %v916 = vadd.f32 %v915, 1.0
    %v917 = vadd.f32 %v915, 2.0
    %v918 = vmul.f32 %v915, %v917
    %v919 = vrsqrt.pop %v918
    %v920 = vmul.f32 %v918, %v919
    %vm921 = vcmp.eq.f32.partialorder %v918, inf
    %v922 = vsel %vm921, %v918, %v920
    %vm923 = vcmp.eq.f32.partialorder %v918, 0.0
    %v924 = vand.u32 %v918, 2147483648
    %v925 = vsel %vm923, %v924, %v922
    %v926 = vadd.f32 %v916, %v925
    %v927 = vlog2.pop %v926
    %v928 = vmul.f32 %v927, 0.6931472
    %v929 = vstv %s187
    %v930 = vrcp.pop %v929
    %v931 = vmul.f32 %v928, %v930
    %v932 = vsub.f32 0.0, %v931
    %v933 = vstv %s188
    %v934 = vmul.f32 %v933, %v932
    %v935 = vlaneseq
    %v936 = vshrl.u32 %v935, 7
    %vm937 = vcmp.eq.s32.totalorder %v936, %v190
    %v938 = vsel %vm937, 1, 0
    %v939 = vcvt.s32.f32 %v938
    %v940 = vmul.f32 %v934, %v939
    %vm941 = vcmask 64512
    %v942 = vsel %vm941, %v940, 0.0
    %943 = vadd.xlane.f32.xlu0 %v942
    %v944 = vpop.xlane.xlu0 %943
    %v945 = vrot.slane %v942, 4
    %v946 = vadd.f32 %v942, %v945
    %v947 = vrot.slane %v946, 2
    %v948 = vadd.f32 %v946, %v947
    %v949 = vrot.slane %v948, 1
    %v950 = vadd.f32 %v948, %v949
    %v951 = vsel %vm941, %v934, -inf
    %952 = vmax.xlane.f32.xlu0 %v951
    %v953 = vpop.xlane.xlu0 %952
    %v954 = vsub.f32 %v934, %v953
    %v955 = vmul.f32 %v954, 1.442695
    %v956 = vpow.pop %v955
    %v957 = vsel %vm941, %v956, 0.0
    %958 = vadd.xlane.f32.xlu0 %v957
    %v959 = vpop.xlane.xlu0 %958
    %v960 = vlog2.pop %v959
    %v961 = vmul.f32 %v960, 0.6931472
    %v962 = vadd.f32 %v953, %v961
    %v963 = vsub.f32 %v962, %v944
    %v964 = vrot.slane %v951, 4
    %v965 = vmax.f32 %v951, %v964
    %v966 = vrot.slane %v965, 2
    %v967 = vmax.f32 %v965, %v966
    %v968 = vrot.slane %v967, 1
    %v969 = vmax.f32 %v967, %v968
    %v970 = vsub.f32 %v934, %v969
    %v971 = vmul.f32 %v970, 1.442695
    %v972 = vpow.pop %v971
    %v973 = vsel %vm941, %v972, 0.0
    %v974 = vrot.slane %v973, 4
    %v975 = vadd.f32 %v973, %v974
    %v976 = vrot.slane %v975, 2
    %v977 = vadd.f32 %v975, %v976
    %v978 = vrot.slane %v977, 1
    %v979 = vadd.f32 %v977, %v978
    %v980 = vlog2.pop %v979
    %v981 = vmul.f32 %v980, 0.6931472
    %v982 = vadd.f32 %v969, %v981
    %v983 = vsub.f32 %v982, %v950
    %v984 = vrot.slane %v963, 4
    %v985 = vadd.f32 %v963, %v984
    %v986 = vrot.slane %v985, 2
    %v987 = vadd.f32 %v985, %v986
    %v988 = vrot.slane %v987, 1
    %v989 = vadd.f32 %v987, %v988
    %v990 = vsel %vm941, %v983, 0.0
    %991 = vadd.xlane.f32.xlu0 %v990
    %v992 = vpop.xlane.xlu0 %991
    %v993 = vadd.f32 %v989, %v992
    %v994 = vmul.f32 %v993, 0.5
    %v995 = vmul.f32 %v994, 0.125
    %997 = vrot.lane.b32.xlu0 %v765, 64
    %v998 = vpop.permute.xlu0 %997
    %v1000 = vmul.f32 %v793, %v998
    %1002 = vrot.lane.b32.xlu0 %v1000, 64
    %v1003 = vpop.permute.xlu0 %1002
    %v1005 = vsel %vm291, %v1003, 0.0
    %1006 = vadd.xlane.f32.xlu0 %v1005
    %v1007 = vpop.xlane.xlu0 %1006
    %v1008 = vmul.f32 %v822, %v814
    %v1009 = vsub.f32 %v1007, %v1008
    %v1010 = vmul.f32 %v745, %v1009
    %v1011 = vmul.f32 %v1010, %v822
    %v1012 = vadd.f32 %v814, %v1011
    %v1013 = vrsqrt.pop %v805
    %v1014 = vmul.f32 %v805, %v1013
    %vm1015 = vcmp.eq.f32.partialorder %v805, inf
    %v1016 = vsel %vm1015, %v805, %v1014
    %vm1017 = vcmp.eq.f32.partialorder %v805, 0.0
    %v1018 = vand.u32 %v805, 2147483648
    %v1019 = vsel %vm1017, %v1018, %v1016
    %v1020 = vmul.f32 %v1010, %v1010
    %v1021 = vsub.f32 %v1020, 1.0
    %v1022 = vmax.f32 %v1021, 0.0
    %v1023 = vrsqrt.pop %v1022
    %v1024 = vmul.f32 %v1022, %v1023
    %vm1025 = vcmp.eq.f32.partialorder %v1022, inf
    %v1026 = vsel %vm1025, %v1022, %v1024
    %vm1027 = vcmp.eq.f32.partialorder %v1022, 0.0
    %v1028 = vand.u32 %v1022, 2147483648
    %v1029 = vsel %vm1027, %v1028, %v1026
    %v1030 = vmul.f32 %v1019, %v1029
    %v1031 = vadd.f32 %v1030, 1e-08
    %v1032 = vrcp.pop %v1031
    %v1033 = vmul.f32 %v1012, %v1032
    %v1034 = vmax.f32 %v1033, -1.0
    %v1035 = vmin.f32 %v1034, 1.0
    %v1036 = vmul.f32 %v1019, %v929
    %v1037 = vadd.f32 %v1036, 1e-08
    %v1038 = vrcp.pop %v1037
    %v1039 = vmul.f32 0.2, %v1038
    %v1040 = vmax.f32 %v1039, -1.0
    %v1041 = vmin.f32 %v1040, 1.0
    %vm1042 = vcmp.eq.s32.totalorder %v190, 1
    %v1043 = vsel %vm1042, %v1041, %v995
    %v1044 = vsel %vm823, %v1035, %v1043
    %1045 = vst [vmem:[%s10] sm:$0xff] %v1044
    // Predicated region
    $region76: #{meru_forward.1} parent=1 // pred_check
      _
    $region77: #{meru_forward.1} parent=1 // pred_check_branch
      %1047 = sbr.rel (0) target = $region79
    $region78: #{meru_forward.1} parent=1 // pred_region
      _
    $region79: #{meru_forward.1} parent=1 // pred_fallthru
      _
    // Predicated region
    $region80: #{meru_forward.1} parent=1 // pred_check
      _
    $region81: #{meru_forward.1} parent=1 // pred_check_branch
      %1049 = sbr.rel (0) target = $region83
    $region82: #{meru_forward.1} parent=1 // pred_region
      _
    $region83: #{meru_forward.1} parent=1 // pred_fallthru
      _
    %1050 = vsyncpa [#allocation5], 1
  %1051 = vsyncmov [#allocation3]
  %s1052 = vpop.sfrf %1051
  %p1053 = scmp.eq.s32.totalorder %s1052, 0
  %p1054 = pneg %p1053
  %1056 = shalt.err (%p1054)

</llo_original>
